<compile_context>
chip_gen: v5e
topology: v5e:2x2
jax: 0.10.0
libtpu: 0.0.40
codegen_flags: <defaults>
</compile_context>

<pallas_src>
import jax
import jax.numpy as jnp
import numpy as np
from jax import lax
from jax.experimental import pallas as pl
from jax.experimental.pallas import tpu as pltpu

BN_EPS = 1e-5
LRELU_SLOPE = 0.1


# ---------------------------------------------------------------------------
# Host-side static helpers (masks / tap offsets / weight re-layout)
# ---------------------------------------------------------------------------
def _valid_mask(n, hp, wp):
    """(1, n*hp*wp) f32 mask: 1 on the interior of the padded (hp, wp) grid."""
    m = np.zeros((n, hp, wp), np.float32)
    m[:, 1:hp - 1, 1:wp - 1] = 1.0
    return m.reshape(1, -1)


def _offsets_stride1(wp, guard):
    """Lane offset of tap (kh, kw) into the guarded padded-flat staging buf."""
    return [guard + (kh - 1) * wp + (kw - 1)
            for kh in range(3) for kw in range(3)]


def _offsets_stride2(mp, wp):
    """Lane offset of tap (kh, kw) into the phase-decomposed padded-flat buf
    (phase (pr, pc) occupies lanes [(2*pr+pc)*mp, (2*pr+pc+1)*mp))."""
    offs = []
    for kh in range(3):
        for kw in range(3):
            ph = (0 if kh == 1 else 1) * 2 + (0 if kw == 1 else 1)
            di = -1 if kh == 0 else 0
            dj = -1 if kw == 0 else 0
            off = ph * mp + di * wp + dj
            assert 0 <= off and off + mp <= 4 * mp  # always in-bounds
            offs.append(off)
    return offs


def _w3x3_t(w_hwio):
    """HWIO (3,3,ci,co) -> (co, 9*ci); columns ordered (tap-major, channel)."""
    co = w_hwio.shape[-1]
    return jnp.transpose(w_hwio, (3, 0, 1, 2)).reshape(co, -1)


# ---------------------------------------------------------------------------
# In-kernel building blocks
# ---------------------------------------------------------------------------
def _bn_lrelu(x, g, b, maskrow, inv_m, pre_masked):
    """Training-mode BatchNorm (batch stats, biased var) + LeakyReLU(0.1) in
    the (C, M) padded-flat layout.  `maskrow` (1, M) marks valid lanes; the
    returned value has exact zeros on the border lanes."""
    if not pre_masked:
        x = x * maskrow
    mean = jnp.sum(x, axis=1, keepdims=True) * inv_m
    d = (x - mean) * maskrow
    var = jnp.sum(d * d, axis=1, keepdims=True) * inv_m
    y = d * lax.rsqrt(var + BN_EPS) * g + b
    y = jnp.where(y >= 0, y, LRELU_SLOPE * y)
    return y * maskrow


def _make_network_kernel(blocks, *, mp, guard, offs1, offs2, c_stg):
    """Fused kernel for the whole residual network (all blocks)."""

    def kernel(*refs):
        it = iter(refs)
        x0_ref, mask0_ref, mask1_ref = next(it), next(it), next(it)
        bps = []
        for blk in blocks:
            d = {"w1": next(it), "w2": next(it)}
            if blk["sep_id"]:
                d["idw"] = next(it)
            d["g1"], d["b1"], d["g2"], d["b2"] = (next(it) for _ in range(4))
            bps.append(d)
        o_ref = next(it)
        h1s2 = next(it) if blocks[0]["stride"] == 2 else None
        stg = next(it)    # guarded stride-1 staging buffer (bf16)
        slab = next(it)   # im2col slab (bf16), reused by every conv

        mask1 = mask1_ref[...]
        # Zero only the guard lanes, once; interiors are always overwritten.
        zg = jnp.zeros((c_stg, guard), jnp.bfloat16)
        stg[:, 0:guard] = zg
        stg[:, guard + mp:guard + mp + guard] = zg

        x = None
        for bi, blk in enumerate(blocks):
            bp = bps[bi]
            cin, cout = blk["cin"], blk["cout"]
            if bi == 0:
                xin, maskrow = x0_ref[...], mask0_ref[...]
            else:
                xin, maskrow = x, mask1

            # --- BN1 + LeakyReLU (batch stats over valid lanes) -------------
            h1 = _bn_lrelu(xin, bp["g1"][...], bp["b1"][...], maskrow,
                           blk["inv_m_in"], pre_masked=True)

            # --- conv1: stage bf16, build im2col slab, ONE MXU dot ----------
            if bi == 0 and blk["stride"] == 2:
                h1s2[...] = h1.astype(jnp.bfloat16)
                src, offs = h1s2, offs2
            else:
                stg[0:cin, guard:guard + mp] = h1.astype(jnp.bfloat16)
                src, offs = stg, offs1
            for t, off in enumerate(offs):
                slab[t * cin:(t + 1) * cin, :] = src[0:cin, off:off + mp]
            r1 = jnp.dot(bp["w1"][...], slab[0:9 * cin, :],
                         preferred_element_type=jnp.float32)
            conv1 = r1[0:cout, :]

            # --- shortcut ----------------------------------------------------
            if blk["has_id"]:
                if blk["fold_id"]:
                    sc = r1[cout:2 * cout, :]           # folded 1x1 conv on h1
                else:
                    if bi == 0 and blk["stride"] == 2:
                        src_sc = x0_ref[:, 0:mp]        # phase (0,0) of x
                    else:
                        src_sc = xin
                    sc = jnp.dot(bp["idw"][...], src_sc.astype(jnp.bfloat16),
                                 preferred_element_type=jnp.float32)
            else:
                sc = xin                                # nn.Identity

            # TODO(synk): F.dropout with p > 0 is not implemented
            # (dropoutRate=0.0 -> identity here).

            # --- BN2 + LeakyReLU ---------------------------------------------
            h2 = _bn_lrelu(conv1, bp["g2"][...], bp["b2"][...], mask1,
                           blk["inv_m_out"], pre_masked=False)

            # --- conv2 (3x3, stride 1): stage, slab, ONE dot -------------------
            stg[0:cout, guard:guard + mp] = h2.astype(jnp.bfloat16)
            for t, off in enumerate(offs1):
                slab[t * cout:(t + 1) * cout, :] = stg[0:cout, off:off + mp]
            conv2 = jnp.dot(bp["w2"][...], slab[0:9 * cout, :],
                            preferred_element_type=jnp.float32)

            # --- residual add; re-zero border lanes for the next consumer ----
            x = (conv2 + sc) * mask1

        o_ref[...] = x.astype(o_ref.dtype)

    return kernel


# ---------------------------------------------------------------------------
# Wrapper: ONE fused pallas_call for the whole network
# ---------------------------------------------------------------------------
def residual_network_pallas(x_nhwc, block_params, block_cfgs):
    n, h, w, cin0 = x_nhwc.shape
    stride0, _ = block_cfgs[0]
    assert stride0 in (1, 2), "only stride 1 or 2 is supported"
    assert h % stride0 == 0 and w % stride0 == 0
    for s, _ in block_cfgs[1:]:
        assert s == 1
    cout = block_params[0]["conv1_w"].shape[-1]
    ho, wo = h // stride0, w // stride0
    hp, wp = ho + 2, wo + 2
    mp = n * hp * wp
    m_out = n * ho * wo
    guard = wp + 1

    # ---- stage the block-0 input into padded-flat (C, M) layout ------------
    if stride0 == 2:
        xt = jnp.transpose(x_nhwc, (3, 0, 1, 2)).reshape(cin0, n, ho, 2, wo, 2)
        xt = jnp.transpose(xt, (0, 3, 5, 1, 2, 4))   # (C, pr, pc, n, ho, wo)
        xp = jnp.pad(xt, ((0, 0),) * 4 + ((1, 1), (1, 1)))
        x0 = xp.reshape(cin0, 4 * mp)
        mask0 = np.tile(_valid_mask(n, hp, wp), (1, 4))
    else:
        xt = jnp.transpose(x_nhwc, (3, 0, 1, 2))      # (C, n, h, w)
        xp = jnp.pad(xt, ((0, 0), (0, 0), (1, 1), (1, 1)))
        x0 = xp.reshape(cin0, mp)
        mask0 = _valid_mask(n, hp, wp)
    mask1 = _valid_mask(n, hp, wp)

    # ---- static per-block config + pre-transposed, pre-cast bf16 weights ----
    blocks = []
    inputs = [x0, jnp.asarray(mask0), jnp.asarray(mask1)]
    for bi, (p, (stride, abr)) in enumerate(zip(block_params, block_cfgs)):
        cin = cin0 if bi == 0 else cout
        has_id = (stride >= 2) or (cin != cout)
        fold_id = has_id and abr          # shortcut source is h1 -> foldable
        sep_id = has_id and not abr
        w1 = _w3x3_t(p["conv1_w"])                    # (cout, 9*cin)
        if fold_id:
            ext = jnp.zeros((cout, 9 * cin), p["id_w"].dtype)
            ext = ext.at[:, 4 * cin:5 * cin].set(p["id_w"].T)  # center tap
            w1 = jnp.concatenate([w1, ext], axis=0)   # (2*cout, 9*cin)
        inputs.append(w1.astype(jnp.bfloat16))
        inputs.append(_w3x3_t(p["conv2_w"]).astype(jnp.bfloat16))
        if sep_id:
            inputs.append(p["id_w"].T.astype(jnp.bfloat16))
        inputs += [p["bn1_g"].reshape(cin, 1), p["bn1_b"].reshape(cin, 1),
                   p["bn2_g"].reshape(cout, 1), p["bn2_b"].reshape(cout, 1)]
        m_in = n * h * w if bi == 0 else m_out
        blocks.append(dict(cin=cin, cout=cout, stride=stride,
                           has_id=has_id, fold_id=fold_id, sep_id=sep_id,
                           inv_m_in=1.0 / m_in, inv_m_out=1.0 / m_out))

    c_stg = max(cin0, cout)
    scratch = []
    if stride0 == 2:
        scratch.append(pltpu.VMEM((cin0, 4 * mp), jnp.bfloat16))
    scratch += [pltpu.VMEM((c_stg, mp + 2 * guard), jnp.bfloat16),
                pltpu.VMEM((9 * c_stg, mp), jnp.bfloat16)]

    kernel = _make_network_kernel(
        blocks, mp=mp, guard=guard,
        offs1=_offsets_stride1(wp, guard),
        offs2=_offsets_stride2(mp, wp),
        c_stg=c_stg)

    vmem = pl.BlockSpec(memory_space=pltpu.MemorySpace.VMEM)
    out = pl.pallas_call(
        kernel,
        out_shape=jax.ShapeDtypeStruct((cout, mp), x_nhwc.dtype),
        in_specs=[vmem] * len(inputs),
        out_specs=vmem,
        scratch_shapes=scratch,
    )(*inputs)

    # (Cout, n, hp, wp) -> drop the zero border -> NHWC
    y = out.reshape(cout, n, hp, wp)[:, :, 1:hp - 1, 1:wp - 1]
    return jnp.transpose(y, (1, 2, 3, 0))


# ---------------------------------------------------------------------------
# Pure-JAX reference (quant=True mirrors the kernel's bf16 operand rounding)
# ---------------------------------------------------------------------------
def ref_bn_lrelu(x, g, b):
    mean = x.mean(axis=(0, 1, 2), keepdims=True)
    var = ((x - mean) ** 2).mean(axis=(0, 1, 2), keepdims=True)
    y = (x - mean) * lax.rsqrt(var + BN_EPS) * g + b
    return jnp.where(y >= 0, y, LRELU_SLOPE * y)


def _q(a, quant):
    return a.astype(jnp.bfloat16).astype(jnp.float32) if quant else a


def ref_conv3x3(x, w, stride, quant):
    return lax.conv_general_dilated(
        _q(x, quant), _q(w, quant), (stride, stride), [(1, 1), (1, 1)],
        dimension_numbers=("NHWC", "HWIO", "NHWC"),
        precision=lax.Precision.HIGHEST)


def ref_conv1x1(x, w, stride, quant):
    return lax.conv_general_dilated(
        _q(x, quant), _q(w, quant)[None, None], (stride, stride),
        [(0, 0), (0, 0)],
        dimension_numbers=("NHWC", "HWIO", "NHWC"),
        precision=lax.Precision.HIGHEST)


def ref_block(x, p, stride, abr, quant):
    h = ref_bn_lrelu(x, p["bn1_g"], p["bn1_b"])
    if abr:
        x = h
    out = ref_conv3x3(h, p["conv1_w"], stride, quant)
    out = ref_bn_lrelu(out, p["bn2_g"], p["bn2_b"])
    out = ref_conv3x3(out, p["conv2_w"], 1, quant)
    sc = ref_conv1x1(x, p["id_w"], stride, quant) if "id_w" in p else x
    return sc + out


def ref_network(x, block_params, block_cfgs, quant=False):
    for p, (s, abr) in zip(block_params, block_cfgs):
        x = ref_block(x, p, s, abr, quant)
    return x


# ---------------------------------------------------------------------------
# Parameter init (deterministic, matching the module's shapes)
# ---------------------------------------------------------------------------
def make_block_params(key, cin, cout, need_identity):
    ks = jax.random.split(key, 7)
    p = {
        "bn1_g": 1.0 + 0.1 * jax.random.normal(ks[0], (cin,), jnp.float32),
        "bn1_b": 0.1 * jax.random.normal(ks[1], (cin,), jnp.float32),
        "conv1_w": jax.random.normal(ks[2], (3, 3, cin, cout), jnp.float32)
                   * (2.0 / (9 * cin)) ** 0.5,
        "bn2_g": 1.0 + 0.1 * jax.random.normal(ks[3], (cout,), jnp.float32),
        "bn2_b": 0.1 * jax.random.normal(ks[4], (cout,), jnp.float32),
        "conv2_w": jax.random.normal(ks[5], (3, 3, cout, cout), jnp.float32)
                   * (2.0 / (9 * cout)) ** 0.5,
    }
    if need_identity:
        p["id_w"] = (jax.random.normal(ks[6], (cin, cout), jnp.float32)
                     * (1.0 / cin) ** 0.5)
    return p


if __name__ == "__main__":
    # ResidualNetwork(numBlocks=2, inChannels=4, outChannels=8, stride=2,
    #                 dropoutRate=0.0, activate_before_residual=True)
    num_blocks, in_ch, out_ch, stride = 2, 4, 8, 2
    activate_before_residual = True

    key = jax.random.PRNGKey(0)
    kx, kp = jax.random.split(key)

    # PyTorch NCHW input (2, 4, 16, 16) -> NHWC for the JAX side.
    x_nchw = jax.random.normal(kx, (2, in_ch, 16, 16), jnp.float32)
    x = jnp.transpose(x_nchw, (0, 2, 3, 1))

    block_params, block_cfgs = [], []
    for l in range(num_blocks):
        cin = in_ch if l == 0 else out_ch
        s = stride if l == 0 else 1
        abr = activate_before_residual and l == 0
        need_id = (s >= 2) or (cin != out_ch)
        block_params.append(
            make_block_params(jax.random.fold_in(kp, l), cin, out_ch, need_id))
        block_cfgs.append((s, abr))

    fwd = jax.jit(
        lambda x: residual_network_pallas(x, block_params, block_cfgs))
    out = fwd(x)
    jax.block_until_ready(out)

    # Tight check vs. a reference with the same bf16 operand rounding.
    ref_q = jax.jit(
        lambda x: ref_network(x, block_params, block_cfgs, True))(x)
    # Loose check vs. the plain f32 reference (bf16 MXU operands tolerated).
    ref_f = jax.jit(
        lambda x: ref_network(x, block_params, block_cfgs, False))(x)
    jax.block_until_ready((ref_q, ref_f))

    assert out.shape == (2, 8, 8, out_ch), out.shape
    assert np.all(np.isfinite(np.asarray(out)))
    np.testing.assert_allclose(np.asarray(out), np.asarray(ref_q),
                               rtol=5e-3, atol=5e-3)
    np.testing.assert_allclose(np.asarray(out), np.asarray(ref_f),
                               rtol=5e-2, atol=5e-2)

    print("KERNEL_OK")
</pallas_src>

<mosaic_0001>
module attributes {stable_mosaic.version = 11 : i64} {
  func.func @kernel(%arg0: memref<4x800xf32, #tpu.memory_space<vmem>>, %arg1: memref<1x800xf32, #tpu.memory_space<vmem>>, %arg2: memref<1x200xf32, #tpu.memory_space<vmem>>, %arg3: memref<16x36xbf16, #tpu.memory_space<vmem>>, %arg4: memref<8x72xbf16, #tpu.memory_space<vmem>>, %arg5: memref<4x1xf32, #tpu.memory_space<vmem>>, %arg6: memref<4x1xf32, #tpu.memory_space<vmem>>, %arg7: memref<8x1xf32, #tpu.memory_space<vmem>>, %arg8: memref<8x1xf32, #tpu.memory_space<vmem>>, %arg9: memref<8x72xbf16, #tpu.memory_space<vmem>>, %arg10: memref<8x72xbf16, #tpu.memory_space<vmem>>, %arg11: memref<8x1xf32, #tpu.memory_space<vmem>>, %arg12: memref<8x1xf32, #tpu.memory_space<vmem>>, %arg13: memref<8x1xf32, #tpu.memory_space<vmem>>, %arg14: memref<8x1xf32, #tpu.memory_space<vmem>>, %arg15: memref<8x200xf32, #tpu.memory_space<vmem>>, %arg16: memref<4x800xbf16, #tpu.memory_space<vmem>>, %arg17: memref<8x222xbf16, #tpu.memory_space<vmem>>, %arg18: memref<72x200xbf16, #tpu.memory_space<vmem>>) attributes {dimension_semantics = [], scalar_prefetch = 0 : i64, scratch_operands = 3 : i64, tpu.core_type = #tpu.core_type<tc>} {
    %c0 = arith.constant 0 : index
    %c0_0 = arith.constant 0 : index
    %0 = vector.load %arg2[%c0, %c0_0] : memref<1x200xf32, #tpu.memory_space<vmem>>, vector<1x200xf32>
    %cst = arith.constant 0.000000e+00 : bf16
    %1 = vector.broadcast %cst : bf16 to vector<8x11xbf16>
    %c0_1 = arith.constant 0 : index
    %c0_2 = arith.constant 0 : index
    %2 = vector.load %arg17[%c0_1, %c0_2] : memref<8x222xbf16, #tpu.memory_space<vmem>>, vector<8x11xbf16>
    tpu.vector_store %arg17[%c0_1, %c0_2], %1 {strides = array<i32>} : memref<8x222xbf16, #tpu.memory_space<vmem>>, vector<8x11xbf16>,
    %c0_3 = arith.constant 0 : index
    %c211 = arith.constant 211 : index
    %3 = vector.load %arg17[%c0_3, %c211] : memref<8x222xbf16, #tpu.memory_space<vmem>>, vector<8x11xbf16>
    tpu.vector_store %arg17[%c0_3, %c211], %1 {strides = array<i32>} : memref<8x222xbf16, #tpu.memory_space<vmem>>, vector<8x11xbf16>,
    %c0_4 = arith.constant 0 : index
    %c0_5 = arith.constant 0 : index
    %4 = vector.load %arg0[%c0_4, %c0_5] : memref<4x800xf32, #tpu.memory_space<vmem>>, vector<4x800xf32>
    %c0_6 = arith.constant 0 : index
    %c0_7 = arith.constant 0 : index
    %5 = vector.load %arg1[%c0_6, %c0_7] : memref<1x800xf32, #tpu.memory_space<vmem>>, vector<1x800xf32>
    %c0_8 = arith.constant 0 : index
    %c0_9 = arith.constant 0 : index
    %6 = vector.load %arg5[%c0_8, %c0_9] : memref<4x1xf32, #tpu.memory_space<vmem>>, vector<4x1xf32>
    %c0_10 = arith.constant 0 : index
    %c0_11 = arith.constant 0 : index
    %7 = vector.load %arg6[%c0_10, %c0_11] : memref<4x1xf32, #tpu.memory_space<vmem>>, vector<4x1xf32>
    %cst_12 = arith.constant dense<0.000000e+00> : vector<4xf32>
    %8 = vector.multi_reduction <add>, %4, %cst_12 [1] : vector<4x800xf32> to vector<4xf32>
    %9 = vector.shape_cast %8 : vector<4xf32> to vector<4x1xf32>
    %cst_13 = arith.constant 0.001953125 : f32
    %10 = vector.broadcast %cst_13 : f32 to vector<4x1xf32>
    %11 = arith.mulf %9, %10 : vector<4x1xf32>
    %12 = vector.broadcast %11 : vector<4x1xf32> to vector<4x800xf32>
    %13 = arith.subf %4, %12 : vector<4x800xf32>
    %14 = vector.broadcast %5 : vector<1x800xf32> to vector<4x800xf32>
    %15 = arith.mulf %13, %14 : vector<4x800xf32>
    %16 = arith.mulf %15, %15 : vector<4x800xf32>
    %cst_14 = arith.constant dense<0.000000e+00> : vector<4xf32>
    %17 = vector.multi_reduction <add>, %16, %cst_14 [1] : vector<4x800xf32> to vector<4xf32>
    %18 = vector.shape_cast %17 : vector<4xf32> to vector<4x1xf32>
    %cst_15 = arith.constant 0.001953125 : f32
    %19 = vector.broadcast %cst_15 : f32 to vector<4x1xf32>
    %20 = arith.mulf %18, %19 : vector<4x1xf32>
    %cst_16 = arith.constant 9.99999974E-6 : f32
    %21 = vector.broadcast %cst_16 : f32 to vector<4x1xf32>
    %22 = arith.addf %20, %21 : vector<4x1xf32>
    %23 = math.rsqrt %22 : vector<4x1xf32>
    %24 = vector.broadcast %23 : vector<4x1xf32> to vector<4x800xf32>
    %25 = arith.mulf %15, %24 : vector<4x800xf32>
    %26 = vector.broadcast %6 : vector<4x1xf32> to vector<4x800xf32>
    %27 = arith.mulf %25, %26 : vector<4x800xf32>
    %28 = vector.broadcast %7 : vector<4x1xf32> to vector<4x800xf32>
    %29 = arith.addf %27, %28 : vector<4x800xf32>
    %cst_17 = arith.constant 0.000000e+00 : f32
    %30 = vector.broadcast %cst_17 : f32 to vector<4x800xf32>
    %31 = arith.cmpf oge, %29, %30 : vector<4x800xf32>
    %cst_18 = arith.constant 1.000000e-01 : f32
    %32 = vector.broadcast %cst_18 : f32 to vector<4x800xf32>
    %33 = arith.mulf %32, %29 : vector<4x800xf32>
    %34 = arith.select %31, %29, %33 : vector<4x800xi1>, vector<4x800xf32>
    %35 = vector.broadcast %5 : vector<1x800xf32> to vector<4x800xf32>
    %36 = arith.mulf %34, %35 : vector<4x800xf32>
    %37 = arith.truncf %36 : vector<4x800xf32> to vector<4x800xbf16>
    %c0_19 = arith.constant 0 : index
    %c0_20 = arith.constant 0 : index
    %38 = vector.load %arg16[%c0_19, %c0_20] : memref<4x800xbf16, #tpu.memory_space<vmem>>, vector<4x800xbf16>
    tpu.vector_store %arg16[%c0_19, %c0_20], %37 {strides = array<i32>} : memref<4x800xbf16, #tpu.memory_space<vmem>>, vector<4x800xbf16>,
    %c0_21 = arith.constant 0 : index
    %c589 = arith.constant 589 : index
    %39 = vector.load %arg16[%c0_21, %c589] : memref<4x800xbf16, #tpu.memory_space<vmem>>, vector<4x200xbf16>
    %c0_22 = arith.constant 0 : index
    %c0_23 = arith.constant 0 : index
    %40 = vector.load %arg18[%c0_22, %c0_23] : memref<72x200xbf16, #tpu.memory_space<vmem>>, vector<4x200xbf16>
    tpu.vector_store %arg18[%c0_22, %c0_23], %39 {strides = array<i32>} : memref<72x200xbf16, #tpu.memory_space<vmem>>, vector<4x200xbf16>,
    %c0_24 = arith.constant 0 : index
    %c390 = arith.constant 390 : index
    %41 = vector.load %arg16[%c0_24, %c390] : memref<4x800xbf16, #tpu.memory_space<vmem>>, vector<4x200xbf16>
    %c4 = arith.constant 4 : index
    %c0_25 = arith.constant 0 : index
    %42 = vector.load %arg18[%c4, %c0_25] : memref<72x200xbf16, #tpu.memory_space<vmem>>, vector<4x200xbf16>
    tpu.vector_store %arg18[%c4, %c0_25], %41 {strides = array<i32>} : memref<72x200xbf16, #tpu.memory_space<vmem>>, vector<4x200xbf16>,
    %c0_26 = arith.constant 0 : index
    %c590 = arith.constant 590 : index
    %43 = vector.load %arg16[%c0_26, %c590] : memref<4x800xbf16, #tpu.memory_space<vmem>>, vector<4x200xbf16>
    %c8 = arith.constant 8 : index
    %c0_27 = arith.constant 0 : index
    %44 = vector.load %arg18[%c8, %c0_27] : memref<72x200xbf16, #tpu.memory_space<vmem>>, vector<4x200xbf16>
    tpu.vector_store %arg18[%c8, %c0_27], %43 {strides = array<i32>} : memref<72x200xbf16, #tpu.memory_space<vmem>>, vector<4x200xbf16>,
    %c0_28 = arith.constant 0 : index
    %c199 = arith.constant 199 : index
    %45 = vector.load %arg16[%c0_28, %c199] : memref<4x800xbf16, #tpu.memory_space<vmem>>, vector<4x200xbf16>
    %c12 = arith.constant 12 : index
    %c0_29 = arith.constant 0 : index
    %46 = vector.load %arg18[%c12, %c0_29] : memref<72x200xbf16, #tpu.memory_space<vmem>>, vector<4x200xbf16>
    tpu.vector_store %arg18[%c12, %c0_29], %45 {strides = array<i32>} : memref<72x200xbf16, #tpu.memory_space<vmem>>, vector<4x200xbf16>,
    %c0_30 = arith.constant 0 : index
    %c0_31 = arith.constant 0 : index
    %47 = vector.load %arg16[%c0_30, %c0_31] : memref<4x800xbf16, #tpu.memory_space<vmem>>, vector<4x200xbf16>
    %c16 = arith.constant 16 : index
    %c0_32 = arith.constant 0 : index
    %48 = vector.load %arg18[%c16, %c0_32] : memref<72x200xbf16, #tpu.memory_space<vmem>>, vector<4x200xbf16>
    tpu.vector_store %arg18[%c16, %c0_32], %47 {strides = array<i32>} : memref<72x200xbf16, #tpu.memory_space<vmem>>, vector<4x200xbf16>,
    %c0_33 = arith.constant 0 : index
    %c200 = arith.constant 200 : index
    %49 = vector.load %arg16[%c0_33, %c200] : memref<4x800xbf16, #tpu.memory_space<vmem>>, vector<4x200xbf16>
    %c20 = arith.constant 20 : index
    %c0_34 = arith.constant 0 : index
    %50 = vector.load %arg18[%c20, %c0_34] : memref<72x200xbf16, #tpu.memory_space<vmem>>, vector<4x200xbf16>
    tpu.vector_store %arg18[%c20, %c0_34], %49 {strides = array<i32>} : memref<72x200xbf16, #tpu.memory_space<vmem>>, vector<4x200xbf16>,
    %c0_35 = arith.constant 0 : index
    %c599 = arith.constant 599 : index
    %51 = vector.load %arg16[%c0_35, %c599] : memref<4x800xbf16, #tpu.memory_space<vmem>>, vector<4x200xbf16>
    %c24 = arith.constant 24 : index
    %c0_36 = arith.constant 0 : index
    %52 = vector.load %arg18[%c24, %c0_36] : memref<72x200xbf16, #tpu.memory_space<vmem>>, vector<4x200xbf16>
    tpu.vector_store %arg18[%c24, %c0_36], %51 {strides = array<i32>} : memref<72x200xbf16, #tpu.memory_space<vmem>>, vector<4x200xbf16>,
    %c0_37 = arith.constant 0 : index
    %c400 = arith.constant 400 : index
    %53 = vector.load %arg16[%c0_37, %c400] : memref<4x800xbf16, #tpu.memory_space<vmem>>, vector<4x200xbf16>
    %c28 = arith.constant 28 : index
    %c0_38 = arith.constant 0 : index
    %54 = vector.load %arg18[%c28, %c0_38] : memref<72x200xbf16, #tpu.memory_space<vmem>>, vector<4x200xbf16>
    tpu.vector_store %arg18[%c28, %c0_38], %53 {strides = array<i32>} : memref<72x200xbf16, #tpu.memory_space<vmem>>, vector<4x200xbf16>,
    %c0_39 = arith.constant 0 : index
    %c600 = arith.constant 600 : index
    %55 = vector.load %arg16[%c0_39, %c600] : memref<4x800xbf16, #tpu.memory_space<vmem>>, vector<4x200xbf16>
    %c32 = arith.constant 32 : index
    %c0_40 = arith.constant 0 : index
    %56 = vector.load %arg18[%c32, %c0_40] : memref<72x200xbf16, #tpu.memory_space<vmem>>, vector<4x200xbf16>
    tpu.vector_store %arg18[%c32, %c0_40], %55 {strides = array<i32>} : memref<72x200xbf16, #tpu.memory_space<vmem>>, vector<4x200xbf16>,
    %c0_41 = arith.constant 0 : index
    %c0_42 = arith.constant 0 : index
    %57 = vector.load %arg3[%c0_41, %c0_42] : memref<16x36xbf16, #tpu.memory_space<vmem>>, vector<16x36xbf16>
    %c0_43 = arith.constant 0 : index
    %c0_44 = arith.constant 0 : index
    %58 = vector.load %arg18[%c0_43, %c0_44] : memref<72x200xbf16, #tpu.memory_space<vmem>>, vector<36x200xbf16>
    %cst_45 = arith.constant dense<0.000000e+00> : vector<16x200xf32>
    %59 = tpu.matmul %57, %58, %cst_45 {dimension_numbers = #tpu.dot_dimension_numbers<[1], [0], [0], [1], [0, 0, 1, 1], [], []>} : vector<16x36xbf16>, vector<36x200xbf16>, vector<16x200xf32> -> vector<16x200xf32>
    %60 = vector.extract_strided_slice %59 {offsets = [0, 0], sizes = [8, 200], strides = [1, 1]} : vector<16x200xf32> to vector<8x200xf32>
    %61 = vector.extract_strided_slice %59 {offsets = [8, 0], sizes = [8, 200], strides = [1, 1]} : vector<16x200xf32> to vector<8x200xf32>
    %c0_46 = arith.constant 0 : index
    %c0_47 = arith.constant 0 : index
    %62 = vector.load %arg7[%c0_46, %c0_47] : memref<8x1xf32, #tpu.memory_space<vmem>>, vector<8x1xf32>
    %c0_48 = arith.constant 0 : index
    %c0_49 = arith.constant 0 : index
    %63 = vector.load %arg8[%c0_48, %c0_49] : memref<8x1xf32, #tpu.memory_space<vmem>>, vector<8x1xf32>
    %64 = vector.broadcast %0 : vector<1x200xf32> to vector<8x200xf32>
    %65 = arith.mulf %60, %64 : vector<8x200xf32>
    %cst_50 = arith.constant dense<0.000000e+00> : vector<8xf32>
    %66 = vector.multi_reduction <add>, %65, %cst_50 [1] : vector<8x200xf32> to vector<8xf32>
    %67 = vector.shape_cast %66 : vector<8xf32> to vector<8x1xf32>
    %cst_51 = arith.constant 7.812500e-03 : f32
    %68 = vector.broadcast %cst_51 : f32 to vector<8x1xf32>
    %69 = arith.mulf %67, %68 : vector<8x1xf32>
    %70 = vector.broadcast %69 : vector<8x1xf32> to vector<8x200xf32>
    %71 = arith.subf %65, %70 : vector<8x200xf32>
    %72 = vector.broadcast %0 : vector<1x200xf32> to vector<8x200xf32>
    %73 = arith.mulf %71, %72 : vector<8x200xf32>
    %74 = arith.mulf %73, %73 : vector<8x200xf32>
    %cst_52 = arith.constant dense<0.000000e+00> : vector<8xf32>
    %75 = vector.multi_reduction <add>, %74, %cst_52 [1] : vector<8x200xf32> to vector<8xf32>
    %76 = vector.shape_cast %75 : vector<8xf32> to vector<8x1xf32>
    %cst_53 = arith.constant 7.812500e-03 : f32
    %77 = vector.broadcast %cst_53 : f32 to vector<8x1xf32>
    %78 = arith.mulf %76, %77 : vector<8x1xf32>
    %cst_54 = arith.constant 9.99999974E-6 : f32
    %79 = vector.broadcast %cst_54 : f32 to vector<8x1xf32>
    %80 = arith.addf %78, %79 : vector<8x1xf32>
    %81 = math.rsqrt %80 : vector<8x1xf32>
    %82 = vector.broadcast %81 : vector<8x1xf32> to vector<8x200xf32>
    %83 = arith.mulf %73, %82 : vector<8x200xf32>
    %84 = vector.broadcast %62 : vector<8x1xf32> to vector<8x200xf32>
    %85 = arith.mulf %83, %84 : vector<8x200xf32>
    %86 = vector.broadcast %63 : vector<8x1xf32> to vector<8x200xf32>
    %87 = arith.addf %85, %86 : vector<8x200xf32>
    %cst_55 = arith.constant 0.000000e+00 : f32
    %88 = vector.broadcast %cst_55 : f32 to vector<8x200xf32>
    %89 = arith.cmpf oge, %87, %88 : vector<8x200xf32>
    %cst_56 = arith.constant 1.000000e-01 : f32
    %90 = vector.broadcast %cst_56 : f32 to vector<8x200xf32>
    %91 = arith.mulf %90, %87 : vector<8x200xf32>
    %92 = arith.select %89, %87, %91 : vector<8x200xi1>, vector<8x200xf32>
    %93 = vector.broadcast %0 : vector<1x200xf32> to vector<8x200xf32>
    %94 = arith.mulf %92, %93 : vector<8x200xf32>
    %95 = arith.truncf %94 : vector<8x200xf32> to vector<8x200xbf16>
    %c0_57 = arith.constant 0 : index
    %c11 = arith.constant 11 : index
    %96 = vector.load %arg17[%c0_57, %c11] : memref<8x222xbf16, #tpu.memory_space<vmem>>, vector<8x200xbf16>
    tpu.vector_store %arg17[%c0_57, %c11], %95 {strides = array<i32>} : memref<8x222xbf16, #tpu.memory_space<vmem>>, vector<8x200xbf16>,
    %c0_58 = arith.constant 0 : index
    %c0_59 = arith.constant 0 : index
    %97 = vector.load %arg17[%c0_58, %c0_59] : memref<8x222xbf16, #tpu.memory_space<vmem>>, vector<8x200xbf16>
    %c0_60 = arith.constant 0 : index
    %c0_61 = arith.constant 0 : index
    %98 = vector.load %arg18[%c0_60, %c0_61] : memref<72x200xbf16, #tpu.memory_space<vmem>>, vector<8x200xbf16>
    tpu.vector_store %arg18[%c0_60, %c0_61], %97 {strides = array<i32>} : memref<72x200xbf16, #tpu.memory_space<vmem>>, vector<8x200xbf16>,
    %c0_62 = arith.constant 0 : index
    %c1 = arith.constant 1 : index
    %99 = vector.load %arg17[%c0_62, %c1] : memref<8x222xbf16, #tpu.memory_space<vmem>>, vector<8x200xbf16>
    %c8_63 = arith.constant 8 : index
    %c0_64 = arith.constant 0 : index
    %100 = vector.load %arg18[%c8_63, %c0_64] : memref<72x200xbf16, #tpu.memory_space<vmem>>, vector<8x200xbf16>
    tpu.vector_store %arg18[%c8_63, %c0_64], %99 {strides = array<i32>} : memref<72x200xbf16, #tpu.memory_space<vmem>>, vector<8x200xbf16>,
    %c0_65 = arith.constant 0 : index
    %c2 = arith.constant 2 : index
    %101 = vector.load %arg17[%c0_65, %c2] : memref<8x222xbf16, #tpu.memory_space<vmem>>, vector<8x200xbf16>
    %c16_66 = arith.constant 16 : index
    %c0_67 = arith.constant 0 : index
    %102 = vector.load %arg18[%c16_66, %c0_67] : memref<72x200xbf16, #tpu.memory_space<vmem>>, vector<8x200xbf16>
    tpu.vector_store %arg18[%c16_66, %c0_67], %101 {strides = array<i32>} : memref<72x200xbf16, #tpu.memory_space<vmem>>, vector<8x200xbf16>,
    %c0_68 = arith.constant 0 : index
    %c10 = arith.constant 10 : index
    %103 = vector.load %arg17[%c0_68, %c10] : memref<8x222xbf16, #tpu.memory_space<vmem>>, vector<8x200xbf16>
    %c24_69 = arith.constant 24 : index
    %c0_70 = arith.constant 0 : index
    %104 = vector.load %arg18[%c24_69, %c0_70] : memref<72x200xbf16, #tpu.memory_space<vmem>>, vector<8x200xbf16>
    tpu.vector_store %arg18[%c24_69, %c0_70], %103 {strides = array<i32>} : memref<72x200xbf16, #tpu.memory_space<vmem>>, vector<8x200xbf16>,
    %c0_71 = arith.constant 0 : index
    %c11_72 = arith.constant 11 : index
    %105 = vector.load %arg17[%c0_71, %c11_72] : memref<8x222xbf16, #tpu.memory_space<vmem>>, vector<8x200xbf16>
    %c32_73 = arith.constant 32 : index
    %c0_74 = arith.constant 0 : index
    %106 = vector.load %arg18[%c32_73, %c0_74] : memref<72x200xbf16, #tpu.memory_space<vmem>>, vector<8x200xbf16>
    tpu.vector_store %arg18[%c32_73, %c0_74], %105 {strides = array<i32>} : memref<72x200xbf16, #tpu.memory_space<vmem>>, vector<8x200xbf16>,
    %c0_75 = arith.constant 0 : index
    %c12_76 = arith.constant 12 : index
    %107 = vector.load %arg17[%c0_75, %c12_76] : memref<8x222xbf16, #tpu.memory_space<vmem>>, vector<8x200xbf16>
    %c40 = arith.constant 40 : index
    %c0_77 = arith.constant 0 : index
    %108 = vector.load %arg18[%c40, %c0_77] : memref<72x200xbf16, #tpu.memory_space<vmem>>, vector<8x200xbf16>
    tpu.vector_store %arg18[%c40, %c0_77], %107 {strides = array<i32>} : memref<72x200xbf16, #tpu.memory_space<vmem>>, vector<8x200xbf16>,
    %c0_78 = arith.constant 0 : index
    %c20_79 = arith.constant 20 : index
    %109 = vector.load %arg17[%c0_78, %c20_79] : memref<8x222xbf16, #tpu.memory_space<vmem>>, vector<8x200xbf16>
    %c48 = arith.constant 48 : index
    %c0_80 = arith.constant 0 : index
    %110 = vector.load %arg18[%c48, %c0_80] : memref<72x200xbf16, #tpu.memory_space<vmem>>, vector<8x200xbf16>
    tpu.vector_store %arg18[%c48, %c0_80], %109 {strides = array<i32>} : memref<72x200xbf16, #tpu.memory_space<vmem>>, vector<8x200xbf16>,
    %c0_81 = arith.constant 0 : index
    %c21 = arith.constant 21 : index
    %111 = vector.load %arg17[%c0_81, %c21] : memref<8x222xbf16, #tpu.memory_space<vmem>>, vector<8x200xbf16>
    %c56 = arith.constant 56 : index
    %c0_82 = arith.constant 0 : index
    %112 = vector.load %arg18[%c56, %c0_82] : memref<72x200xbf16, #tpu.memory_space<vmem>>, vector<8x200xbf16>
    tpu.vector_store %arg18[%c56, %c0_82], %111 {strides = array<i32>} : memref<72x200xbf16, #tpu.memory_space<vmem>>, vector<8x200xbf16>,
    %c0_83 = arith.constant 0 : index
    %c22 = arith.constant 22 : index
    %113 = vector.load %arg17[%c0_83, %c22] : memref<8x222xbf16, #tpu.memory_space<vmem>>, vector<8x200xbf16>
    %c64 = arith.constant 64 : index
    %c0_84 = arith.constant 0 : index
    %114 = vector.load %arg18[%c64, %c0_84] : memref<72x200xbf16, #tpu.memory_space<vmem>>, vector<8x200xbf16>
    tpu.vector_store %arg18[%c64, %c0_84], %113 {strides = array<i32>} : memref<72x200xbf16, #tpu.memory_space<vmem>>, vector<8x200xbf16>,
    %c0_85 = arith.constant 0 : index
    %c0_86 = arith.constant 0 : index
    %115 = vector.load %arg4[%c0_85, %c0_86] : memref<8x72xbf16, #tpu.memory_space<vmem>>, vector<8x72xbf16>
    %c0_87 = arith.constant 0 : index
    %c0_88 = arith.constant 0 : index
    %116 = vector.load %arg18[%c0_87, %c0_88] : memref<72x200xbf16, #tpu.memory_space<vmem>>, vector<72x200xbf16>
    %cst_89 = arith.constant dense<0.000000e+00> : vector<8x200xf32>
    %117 = tpu.matmul %115, %116, %cst_89 {dimension_numbers = #tpu.dot_dimension_numbers<[1], [0], [0], [1], [0, 0, 1, 1], [], []>} : vector<8x72xbf16>, vector<72x200xbf16>, vector<8x200xf32> -> vector<8x200xf32>
    %118 = arith.addf %117, %61 : vector<8x200xf32>
    %119 = vector.broadcast %0 : vector<1x200xf32> to vector<8x200xf32>
    %120 = arith.mulf %118, %119 : vector<8x200xf32>
    %c0_90 = arith.constant 0 : index
    %c0_91 = arith.constant 0 : index
    %121 = vector.load %arg11[%c0_90, %c0_91] : memref<8x1xf32, #tpu.memory_space<vmem>>, vector<8x1xf32>
    %c0_92 = arith.constant 0 : index
    %c0_93 = arith.constant 0 : index
    %122 = vector.load %arg12[%c0_92, %c0_93] : memref<8x1xf32, #tpu.memory_space<vmem>>, vector<8x1xf32>
    %cst_94 = arith.constant dense<0.000000e+00> : vector<8xf32>
    %123 = vector.multi_reduction <add>, %120, %cst_94 [1] : vector<8x200xf32> to vector<8xf32>
    %124 = vector.shape_cast %123 : vector<8xf32> to vector<8x1xf32>
    %cst_95 = arith.constant 7.812500e-03 : f32
    %125 = vector.broadcast %cst_95 : f32 to vector<8x1xf32>
    %126 = arith.mulf %124, %125 : vector<8x1xf32>
    %127 = vector.broadcast %126 : vector<8x1xf32> to vector<8x200xf32>
    %128 = arith.subf %120, %127 : vector<8x200xf32>
    %129 = vector.broadcast %0 : vector<1x200xf32> to vector<8x200xf32>
    %130 = arith.mulf %128, %129 : vector<8x200xf32>
    %131 = arith.mulf %130, %130 : vector<8x200xf32>
    %cst_96 = arith.constant dense<0.000000e+00> : vector<8xf32>
    %132 = vector.multi_reduction <add>, %131, %cst_96 [1] : vector<8x200xf32> to vector<8xf32>
    %133 = vector.shape_cast %132 : vector<8xf32> to vector<8x1xf32>
    %cst_97 = arith.constant 7.812500e-03 : f32
    %134 = vector.broadcast %cst_97 : f32 to vector<8x1xf32>
    %135 = arith.mulf %133, %134 : vector<8x1xf32>
    %cst_98 = arith.constant 9.99999974E-6 : f32
    %136 = vector.broadcast %cst_98 : f32 to vector<8x1xf32>
    %137 = arith.addf %135, %136 : vector<8x1xf32>
    %138 = math.rsqrt %137 : vector<8x1xf32>
    %139 = vector.broadcast %138 : vector<8x1xf32> to vector<8x200xf32>
    %140 = arith.mulf %130, %139 : vector<8x200xf32>
    %141 = vector.broadcast %121 : vector<8x1xf32> to vector<8x200xf32>
    %142 = arith.mulf %140, %141 : vector<8x200xf32>
    %143 = vector.broadcast %122 : vector<8x1xf32> to vector<8x200xf32>
    %144 = arith.addf %142, %143 : vector<8x200xf32>
    %cst_99 = arith.constant 0.000000e+00 : f32
    %145 = vector.broadcast %cst_99 : f32 to vector<8x200xf32>
    %146 = arith.cmpf oge, %144, %145 : vector<8x200xf32>
    %cst_100 = arith.constant 1.000000e-01 : f32
    %147 = vector.broadcast %cst_100 : f32 to vector<8x200xf32>
    %148 = arith.mulf %147, %144 : vector<8x200xf32>
    %149 = arith.select %146, %144, %148 : vector<8x200xi1>, vector<8x200xf32>
    %150 = vector.broadcast %0 : vector<1x200xf32> to vector<8x200xf32>
    %151 = arith.mulf %149, %150 : vector<8x200xf32>
    %152 = arith.truncf %151 : vector<8x200xf32> to vector<8x200xbf16>
    %c0_101 = arith.constant 0 : index
    %c11_102 = arith.constant 11 : index
    %153 = vector.load %arg17[%c0_101, %c11_102] : memref<8x222xbf16, #tpu.memory_space<vmem>>, vector<8x200xbf16>
    tpu.vector_store %arg17[%c0_101, %c11_102], %152 {strides = array<i32>} : memref<8x222xbf16, #tpu.memory_space<vmem>>, vector<8x200xbf16>,
    %c0_103 = arith.constant 0 : index
    %c0_104 = arith.constant 0 : index
    %154 = vector.load %arg17[%c0_103, %c0_104] : memref<8x222xbf16, #tpu.memory_space<vmem>>, vector<8x200xbf16>
    %c0_105 = arith.constant 0 : index
    %c0_106 = arith.constant 0 : index
    %155 = vector.load %arg18[%c0_105, %c0_106] : memref<72x200xbf16, #tpu.memory_space<vmem>>, vector<8x200xbf16>
    tpu.vector_store %arg18[%c0_105, %c0_106], %154 {strides = array<i32>} : memref<72x200xbf16, #tpu.memory_space<vmem>>, vector<8x200xbf16>,
    %c0_107 = arith.constant 0 : index
    %c1_108 = arith.constant 1 : index
    %156 = vector.load %arg17[%c0_107, %c1_108] : memref<8x222xbf16, #tpu.memory_space<vmem>>, vector<8x200xbf16>
    %c8_109 = arith.constant 8 : index
    %c0_110 = arith.constant 0 : index
    %157 = vector.load %arg18[%c8_109, %c0_110] : memref<72x200xbf16, #tpu.memory_space<vmem>>, vector<8x200xbf16>
    tpu.vector_store %arg18[%c8_109, %c0_110], %156 {strides = array<i32>} : memref<72x200xbf16, #tpu.memory_space<vmem>>, vector<8x200xbf16>,
    %c0_111 = arith.constant 0 : index
    %c2_112 = arith.constant 2 : index
    %158 = vector.load %arg17[%c0_111, %c2_112] : memref<8x222xbf16, #tpu.memory_space<vmem>>, vector<8x200xbf16>
    %c16_113 = arith.constant 16 : index
    %c0_114 = arith.constant 0 : index
    %159 = vector.load %arg18[%c16_113, %c0_114] : memref<72x200xbf16, #tpu.memory_space<vmem>>, vector<8x200xbf16>
    tpu.vector_store %arg18[%c16_113, %c0_114], %158 {strides = array<i32>} : memref<72x200xbf16, #tpu.memory_space<vmem>>, vector<8x200xbf16>,
    %c0_115 = arith.constant 0 : index
    %c10_116 = arith.constant 10 : index
    %160 = vector.load %arg17[%c0_115, %c10_116] : memref<8x222xbf16, #tpu.memory_space<vmem>>, vector<8x200xbf16>
    %c24_117 = arith.constant 24 : index
    %c0_118 = arith.constant 0 : index
    %161 = vector.load %arg18[%c24_117, %c0_118] : memref<72x200xbf16, #tpu.memory_space<vmem>>, vector<8x200xbf16>
    tpu.vector_store %arg18[%c24_117, %c0_118], %160 {strides = array<i32>} : memref<72x200xbf16, #tpu.memory_space<vmem>>, vector<8x200xbf16>,
    %c0_119 = arith.constant 0 : index
    %c11_120 = arith.constant 11 : index
    %162 = vector.load %arg17[%c0_119, %c11_120] : memref<8x222xbf16, #tpu.memory_space<vmem>>, vector<8x200xbf16>
    %c32_121 = arith.constant 32 : index
    %c0_122 = arith.constant 0 : index
    %163 = vector.load %arg18[%c32_121, %c0_122] : memref<72x200xbf16, #tpu.memory_space<vmem>>, vector<8x200xbf16>
    tpu.vector_store %arg18[%c32_121, %c0_122], %162 {strides = array<i32>} : memref<72x200xbf16, #tpu.memory_space<vmem>>, vector<8x200xbf16>,
    %c0_123 = arith.constant 0 : index
    %c12_124 = arith.constant 12 : index
    %164 = vector.load %arg17[%c0_123, %c12_124] : memref<8x222xbf16, #tpu.memory_space<vmem>>, vector<8x200xbf16>
    %c40_125 = arith.constant 40 : index
    %c0_126 = arith.constant 0 : index
    %165 = vector.load %arg18[%c40_125, %c0_126] : memref<72x200xbf16, #tpu.memory_space<vmem>>, vector<8x200xbf16>
    tpu.vector_store %arg18[%c40_125, %c0_126], %164 {strides = array<i32>} : memref<72x200xbf16, #tpu.memory_space<vmem>>, vector<8x200xbf16>,
    %c0_127 = arith.constant 0 : index
    %c20_128 = arith.constant 20 : index
    %166 = vector.load %arg17[%c0_127, %c20_128] : memref<8x222xbf16, #tpu.memory_space<vmem>>, vector<8x200xbf16>
    %c48_129 = arith.constant 48 : index
    %c0_130 = arith.constant 0 : index
    %167 = vector.load %arg18[%c48_129, %c0_130] : memref<72x200xbf16, #tpu.memory_space<vmem>>, vector<8x200xbf16>
    tpu.vector_store %arg18[%c48_129, %c0_130], %166 {strides = array<i32>} : memref<72x200xbf16, #tpu.memory_space<vmem>>, vector<8x200xbf16>,
    %c0_131 = arith.constant 0 : index
    %c21_132 = arith.constant 21 : index
    %168 = vector.load %arg17[%c0_131, %c21_132] : memref<8x222xbf16, #tpu.memory_space<vmem>>, vector<8x200xbf16>
    %c56_133 = arith.constant 56 : index
    %c0_134 = arith.constant 0 : index
    %169 = vector.load %arg18[%c56_133, %c0_134] : memref<72x200xbf16, #tpu.memory_space<vmem>>, vector<8x200xbf16>
    tpu.vector_store %arg18[%c56_133, %c0_134], %168 {strides = array<i32>} : memref<72x200xbf16, #tpu.memory_space<vmem>>, vector<8x200xbf16>,
    %c0_135 = arith.constant 0 : index
    %c22_136 = arith.constant 22 : index
    %170 = vector.load %arg17[%c0_135, %c22_136] : memref<8x222xbf16, #tpu.memory_space<vmem>>, vector<8x200xbf16>
    %c64_137 = arith.constant 64 : index
    %c0_138 = arith.constant 0 : index
    %171 = vector.load %arg18[%c64_137, %c0_138] : memref<72x200xbf16, #tpu.memory_space<vmem>>, vector<8x200xbf16>
    tpu.vector_store %arg18[%c64_137, %c0_138], %170 {strides = array<i32>} : memref<72x200xbf16, #tpu.memory_space<vmem>>, vector<8x200xbf16>,
    %c0_139 = arith.constant 0 : index
    %c0_140 = arith.constant 0 : index
    %172 = vector.load %arg9[%c0_139, %c0_140] : memref<8x72xbf16, #tpu.memory_space<vmem>>, vector<8x72xbf16>
    %c0_141 = arith.constant 0 : index
    %c0_142 = arith.constant 0 : index
    %173 = vector.load %arg18[%c0_141, %c0_142] : memref<72x200xbf16, #tpu.memory_space<vmem>>, vector<72x200xbf16>
    %cst_143 = arith.constant dense<0.000000e+00> : vector<8x200xf32>
    %174 = tpu.matmul %172, %173, %cst_143 {dimension_numbers = #tpu.dot_dimension_numbers<[1], [0], [0], [1], [0, 0, 1, 1], [], []>} : vector<8x72xbf16>, vector<72x200xbf16>, vector<8x200xf32> -> vector<8x200xf32>
    %c0_144 = arith.constant 0 : index
    %c0_145 = arith.constant 0 : index
    %175 = vector.load %arg13[%c0_144, %c0_145] : memref<8x1xf32, #tpu.memory_space<vmem>>, vector<8x1xf32>
    %c0_146 = arith.constant 0 : index
    %c0_147 = arith.constant 0 : index
    %176 = vector.load %arg14[%c0_146, %c0_147] : memref<8x1xf32, #tpu.memory_space<vmem>>, vector<8x1xf32>
    %177 = vector.broadcast %0 : vector<1x200xf32> to vector<8x200xf32>
    %178 = arith.mulf %174, %177 : vector<8x200xf32>
    %cst_148 = arith.constant dense<0.000000e+00> : vector<8xf32>
    %179 = vector.multi_reduction <add>, %178, %cst_148 [1] : vector<8x200xf32> to vector<8xf32>
    %180 = vector.shape_cast %179 : vector<8xf32> to vector<8x1xf32>
    %cst_149 = arith.constant 7.812500e-03 : f32
    %181 = vector.broadcast %cst_149 : f32 to vector<8x1xf32>
    %182 = arith.mulf %180, %181 : vector<8x1xf32>
    %183 = vector.broadcast %182 : vector<8x1xf32> to vector<8x200xf32>
    %184 = arith.subf %178, %183 : vector<8x200xf32>
    %185 = vector.broadcast %0 : vector<1x200xf32> to vector<8x200xf32>
    %186 = arith.mulf %184, %185 : vector<8x200xf32>
    %187 = arith.mulf %186, %186 : vector<8x200xf32>
    %cst_150 = arith.constant dense<0.000000e+00> : vector<8xf32>
    %188 = vector.multi_reduction <add>, %187, %cst_150 [1] : vector<8x200xf32> to vector<8xf32>
    %189 = vector.shape_cast %188 : vector<8xf32> to vector<8x1xf32>
    %cst_151 = arith.constant 7.812500e-03 : f32
    %190 = vector.broadcast %cst_151 : f32 to vector<8x1xf32>
    %191 = arith.mulf %189, %190 : vector<8x1xf32>
    %cst_152 = arith.constant 9.99999974E-6 : f32
    %192 = vector.broadcast %cst_152 : f32 to vector<8x1xf32>
    %193 = arith.addf %191, %192 : vector<8x1xf32>
    %194 = math.rsqrt %193 : vector<8x1xf32>
    %195 = vector.broadcast %194 : vector<8x1xf32> to vector<8x200xf32>
    %196 = arith.mulf %186, %195 : vector<8x200xf32>
    %197 = vector.broadcast %175 : vector<8x1xf32> to vector<8x200xf32>
    %198 = arith.mulf %196, %197 : vector<8x200xf32>
    %199 = vector.broadcast %176 : vector<8x1xf32> to vector<8x200xf32>
    %200 = arith.addf %198, %199 : vector<8x200xf32>
    %cst_153 = arith.constant 0.000000e+00 : f32
    %201 = vector.broadcast %cst_153 : f32 to vector<8x200xf32>
    %202 = arith.cmpf oge, %200, %201 : vector<8x200xf32>
    %cst_154 = arith.constant 1.000000e-01 : f32
    %203 = vector.broadcast %cst_154 : f32 to vector<8x200xf32>
    %204 = arith.mulf %203, %200 : vector<8x200xf32>
    %205 = arith.select %202, %200, %204 : vector<8x200xi1>, vector<8x200xf32>
    %206 = vector.broadcast %0 : vector<1x200xf32> to vector<8x200xf32>
    %207 = arith.mulf %205, %206 : vector<8x200xf32>
    %208 = arith.truncf %207 : vector<8x200xf32> to vector<8x200xbf16>
    %c0_155 = arith.constant 0 : index
    %c11_156 = arith.constant 11 : index
    %209 = vector.load %arg17[%c0_155, %c11_156] : memref<8x222xbf16, #tpu.memory_space<vmem>>, vector<8x200xbf16>
    tpu.vector_store %arg17[%c0_155, %c11_156], %208 {strides = array<i32>} : memref<8x222xbf16, #tpu.memory_space<vmem>>, vector<8x200xbf16>,
    %c0_157 = arith.constant 0 : index
    %c0_158 = arith.constant 0 : index
    %210 = vector.load %arg17[%c0_157, %c0_158] : memref<8x222xbf16, #tpu.memory_space<vmem>>, vector<8x200xbf16>
    %c0_159 = arith.constant 0 : index
    %c0_160 = arith.constant 0 : index
    %211 = vector.load %arg18[%c0_159, %c0_160] : memref<72x200xbf16, #tpu.memory_space<vmem>>, vector<8x200xbf16>
    tpu.vector_store %arg18[%c0_159, %c0_160], %210 {strides = array<i32>} : memref<72x200xbf16, #tpu.memory_space<vmem>>, vector<8x200xbf16>,
    %c0_161 = arith.constant 0 : index
    %c1_162 = arith.constant 1 : index
    %212 = vector.load %arg17[%c0_161, %c1_162] : memref<8x222xbf16, #tpu.memory_space<vmem>>, vector<8x200xbf16>
    %c8_163 = arith.constant 8 : index
    %c0_164 = arith.constant 0 : index
    %213 = vector.load %arg18[%c8_163, %c0_164] : memref<72x200xbf16, #tpu.memory_space<vmem>>, vector<8x200xbf16>
    tpu.vector_store %arg18[%c8_163, %c0_164], %212 {strides = array<i32>} : memref<72x200xbf16, #tpu.memory_space<vmem>>, vector<8x200xbf16>,
    %c0_165 = arith.constant 0 : index
    %c2_166 = arith.constant 2 : index
    %214 = vector.load %arg17[%c0_165, %c2_166] : memref<8x222xbf16, #tpu.memory_space<vmem>>, vector<8x200xbf16>
    %c16_167 = arith.constant 16 : index
    %c0_168 = arith.constant 0 : index
    %215 = vector.load %arg18[%c16_167, %c0_168] : memref<72x200xbf16, #tpu.memory_space<vmem>>, vector<8x200xbf16>
    tpu.vector_store %arg18[%c16_167, %c0_168], %214 {strides = array<i32>} : memref<72x200xbf16, #tpu.memory_space<vmem>>, vector<8x200xbf16>,
    %c0_169 = arith.constant 0 : index
    %c10_170 = arith.constant 10 : index
    %216 = vector.load %arg17[%c0_169, %c10_170] : memref<8x222xbf16, #tpu.memory_space<vmem>>, vector<8x200xbf16>
    %c24_171 = arith.constant 24 : index
    %c0_172 = arith.constant 0 : index
    %217 = vector.load %arg18[%c24_171, %c0_172] : memref<72x200xbf16, #tpu.memory_space<vmem>>, vector<8x200xbf16>
    tpu.vector_store %arg18[%c24_171, %c0_172], %216 {strides = array<i32>} : memref<72x200xbf16, #tpu.memory_space<vmem>>, vector<8x200xbf16>,
    %c0_173 = arith.constant 0 : index
    %c11_174 = arith.constant 11 : index
    %218 = vector.load %arg17[%c0_173, %c11_174] : memref<8x222xbf16, #tpu.memory_space<vmem>>, vector<8x200xbf16>
    %c32_175 = arith.constant 32 : index
    %c0_176 = arith.constant 0 : index
    %219 = vector.load %arg18[%c32_175, %c0_176] : memref<72x200xbf16, #tpu.memory_space<vmem>>, vector<8x200xbf16>
    tpu.vector_store %arg18[%c32_175, %c0_176], %218 {strides = array<i32>} : memref<72x200xbf16, #tpu.memory_space<vmem>>, vector<8x200xbf16>,
    %c0_177 = arith.constant 0 : index
    %c12_178 = arith.constant 12 : index
    %220 = vector.load %arg17[%c0_177, %c12_178] : memref<8x222xbf16, #tpu.memory_space<vmem>>, vector<8x200xbf16>
    %c40_179 = arith.constant 40 : index
    %c0_180 = arith.constant 0 : index
    %221 = vector.load %arg18[%c40_179, %c0_180] : memref<72x200xbf16, #tpu.memory_space<vmem>>, vector<8x200xbf16>
    tpu.vector_store %arg18[%c40_179, %c0_180], %220 {strides = array<i32>} : memref<72x200xbf16, #tpu.memory_space<vmem>>, vector<8x200xbf16>,
    %c0_181 = arith.constant 0 : index
    %c20_182 = arith.constant 20 : index
    %222 = vector.load %arg17[%c0_181, %c20_182] : memref<8x222xbf16, #tpu.memory_space<vmem>>, vector<8x200xbf16>
    %c48_183 = arith.constant 48 : index
    %c0_184 = arith.constant 0 : index
    %223 = vector.load %arg18[%c48_183, %c0_184] : memref<72x200xbf16, #tpu.memory_space<vmem>>, vector<8x200xbf16>
    tpu.vector_store %arg18[%c48_183, %c0_184], %222 {strides = array<i32>} : memref<72x200xbf16, #tpu.memory_space<vmem>>, vector<8x200xbf16>,
    %c0_185 = arith.constant 0 : index
    %c21_186 = arith.constant 21 : index
    %224 = vector.load %arg17[%c0_185, %c21_186] : memref<8x222xbf16, #tpu.memory_space<vmem>>, vector<8x200xbf16>
    %c56_187 = arith.constant 56 : index
    %c0_188 = arith.constant 0 : index
    %225 = vector.load %arg18[%c56_187, %c0_188] : memref<72x200xbf16, #tpu.memory_space<vmem>>, vector<8x200xbf16>
    tpu.vector_store %arg18[%c56_187, %c0_188], %224 {strides = array<i32>} : memref<72x200xbf16, #tpu.memory_space<vmem>>, vector<8x200xbf16>,
    %c0_189 = arith.constant 0 : index
    %c22_190 = arith.constant 22 : index
    %226 = vector.load %arg17[%c0_189, %c22_190] : memref<8x222xbf16, #tpu.memory_space<vmem>>, vector<8x200xbf16>
    %c64_191 = arith.constant 64 : index
    %c0_192 = arith.constant 0 : index
    %227 = vector.load %arg18[%c64_191, %c0_192] : memref<72x200xbf16, #tpu.memory_space<vmem>>, vector<8x200xbf16>
    tpu.vector_store %arg18[%c64_191, %c0_192], %226 {strides = array<i32>} : memref<72x200xbf16, #tpu.memory_space<vmem>>, vector<8x200xbf16>,
    %c0_193 = arith.constant 0 : index
    %c0_194 = arith.constant 0 : index
    %228 = vector.load %arg10[%c0_193, %c0_194] : memref<8x72xbf16, #tpu.memory_space<vmem>>, vector<8x72xbf16>
    %c0_195 = arith.constant 0 : index
    %c0_196 = arith.constant 0 : index
    %229 = vector.load %arg18[%c0_195, %c0_196] : memref<72x200xbf16, #tpu.memory_space<vmem>>, vector<72x200xbf16>
    %cst_197 = arith.constant dense<0.000000e+00> : vector<8x200xf32>
    %230 = tpu.matmul %228, %229, %cst_197 {dimension_numbers = #tpu.dot_dimension_numbers<[1], [0], [0], [1], [0, 0, 1, 1], [], []>} : vector<8x72xbf16>, vector<72x200xbf16>, vector<8x200xf32> -> vector<8x200xf32>
    %231 = arith.addf %230, %120 : vector<8x200xf32>
    %232 = vector.broadcast %0 : vector<1x200xf32> to vector<8x200xf32>
    %233 = arith.mulf %231, %232 : vector<8x200xf32>
    %c0_198 = arith.constant 0 : index
    %c0_199 = arith.constant 0 : index
    %234 = vector.load %arg15[%c0_198, %c0_199] : memref<8x200xf32, #tpu.memory_space<vmem>>, vector<8x200xf32>
    tpu.vector_store %arg15[%c0_198, %c0_199], %233 {strides = array<i32>} : memref<8x200xf32, #tpu.memory_space<vmem>>, vector<8x200xf32>,
    return
  }
}

</mosaic_0001>

<llo_original>
// kernel: _lambda_.1
$region0: #{_lambda_.1}
  #allocation0 [shape = 'u32[]', space=smem, size = 0x4, offset = 0x4, fixed_abs, tag = 'smem constant byte address 0x4 - core index']
  #allocation1 [shape = 'u32[72,128]{1,0:T(1,128)}', space=vmem, size = 0x9000, scoped, tag = 'internal scratch']
  #allocation2 [shape = 'bf16[4,800]{1,0:T(4,128)(2,1)}', space=vmem, size = 0x1c00, scoped, tag = 'scratch operand']
  #allocation3 [shape = 'bf16[8,222]{1,0:T(8,128)(2,1)}', space=vmem, size = 0x1000, scoped, tag = 'scratch operand']
  #allocation4 [shape = 'bf16[72,200]{1,0:T(8,128)(2,1)}', space=vmem, size = 0x9000, scoped, tag = 'scratch operand']
  %s0 = inlined_call_operand.vmem [shape: f32[4,800], index: 0, kind: input, shape index: {}]
  %s1 = inlined_call_operand.vmem [shape: f32[1,800], index: 1, kind: input, shape index: {}]
  %s2 = inlined_call_operand.vmem [shape: f32[1,200], index: 2, kind: input, shape index: {}]
  %s3 = inlined_call_operand.vmem [shape: bf16[16,36], index: 3, kind: input, shape index: {}]
  %s4 = inlined_call_operand.vmem [shape: bf16[8,72], index: 4, kind: input, shape index: {}]
  %s5 = inlined_call_operand.vmem [shape: f32[4,1], index: 5, kind: input, shape index: {}]
  %s6 = inlined_call_operand.vmem [shape: f32[4,1], index: 6, kind: input, shape index: {}]
  %s7 = inlined_call_operand.vmem [shape: f32[8,1], index: 7, kind: input, shape index: {}]
  %s8 = inlined_call_operand.vmem [shape: f32[8,1], index: 8, kind: input, shape index: {}]
  %s9 = inlined_call_operand.vmem [shape: bf16[8,72], index: 9, kind: input, shape index: {}]
  %s10 = inlined_call_operand.vmem [shape: bf16[8,72], index: 10, kind: input, shape index: {}]
  %s11 = inlined_call_operand.vmem [shape: f32[8,1], index: 11, kind: input, shape index: {}]
  %s12 = inlined_call_operand.vmem [shape: f32[8,1], index: 12, kind: input, shape index: {}]
  %s13 = inlined_call_operand.vmem [shape: f32[8,1], index: 13, kind: input, shape index: {}]
  %s14 = inlined_call_operand.vmem [shape: f32[8,1], index: 14, kind: input, shape index: {}]
  %s15 = inlined_call_operand.vmem [shape: f32[8,200], index: 15, kind: output, shape index: {}]
  %s16 = sld [smem:[#allocation0]]
  $region70: #{_lambda_.1} parent=0
    _
  %s18 = ssub.s32 1, %s16
  %s19 = scalar_select 0, %s18, %s16
  // Predicated region
  $region2: #{_lambda_.1} parent=0 // pred_check
    _
  $region3: #{_lambda_.1} parent=0 // pred_check_branch
    %21 = sbr.rel (0) target = $region5
  $region4: #{_lambda_.1} parent=0 // pred_region
    _
  $region5: #{_lambda_.1} parent=0 // pred_fallthru
    _
  // Predicated region
  $region6: #{_lambda_.1} parent=0 // pred_check
    _
  $region7: #{_lambda_.1} parent=0 // pred_check_branch
    %23 = sbr.rel (0) target = $region9
  $region8: #{_lambda_.1} parent=0 // pred_region
    _
  $region9: #{_lambda_.1} parent=0 // pred_fallthru
    _
  // Predicated region
  $region10: #{_lambda_.1} parent=0 // pred_check
    _
  $region11: #{_lambda_.1} parent=0 // pred_check_branch
    %25 = sbr.rel (0) target = $region13
  $region12: #{_lambda_.1} parent=0 // pred_region
    _
  $region13: #{_lambda_.1} parent=0 // pred_fallthru
    _
  // Predicated region
  $region14: #{_lambda_.1} parent=0 // pred_check
    _
  $region15: #{_lambda_.1} parent=0 // pred_check_branch
    %27 = sbr.rel (0) target = $region17
  $region16: #{_lambda_.1} parent=0 // pred_region
    _
  $region17: #{_lambda_.1} parent=0 // pred_fallthru
    _
  // Predicated region
  $region18: #{_lambda_.1} parent=0 // pred_check
    _
  $region19: #{_lambda_.1} parent=0 // pred_check_branch
    %29 = sbr.rel (0) target = $region21
  $region20: #{_lambda_.1} parent=0 // pred_region
    _
  $region21: #{_lambda_.1} parent=0 // pred_fallthru
    _
  // Predicated region
  $region22: #{_lambda_.1} parent=0 // pred_check
    _
  $region23: #{_lambda_.1} parent=0 // pred_check_branch
    %31 = sbr.rel (0) target = $region25
  $region24: #{_lambda_.1} parent=0 // pred_region
    _
  $region25: #{_lambda_.1} parent=0 // pred_fallthru
    _
  // Predicated region
  $region26: #{_lambda_.1} parent=0 // pred_check
    _
  $region27: #{_lambda_.1} parent=0 // pred_check_branch
    %33 = sbr.rel (0) target = $region29
  $region28: #{_lambda_.1} parent=0 // pred_region
    _
  $region29: #{_lambda_.1} parent=0 // pred_fallthru
    _
  // Predicated region
  $region30: #{_lambda_.1} parent=0 // pred_check
    _
  $region31: #{_lambda_.1} parent=0 // pred_check_branch
    %35 = sbr.rel (0) target = $region33
  $region32: #{_lambda_.1} parent=0 // pred_region
    _
  $region33: #{_lambda_.1} parent=0 // pred_fallthru
    _
  // Predicated region
  $region34: #{_lambda_.1} parent=0 // pred_check
    _
  $region35: #{_lambda_.1} parent=0 // pred_check_branch
    %37 = sbr.rel (0) target = $region37
  $region36: #{_lambda_.1} parent=0 // pred_region
    _
  $region37: #{_lambda_.1} parent=0 // pred_fallthru
    _
  // Predicated region
  $region38: #{_lambda_.1} parent=0 // pred_check
    _
  $region39: #{_lambda_.1} parent=0 // pred_check_branch
    %39 = sbr.rel (0) target = $region41
  $region40: #{_lambda_.1} parent=0 // pred_region
    _
  $region41: #{_lambda_.1} parent=0 // pred_fallthru
    _
  // Predicated region
  $region42: #{_lambda_.1} parent=0 // pred_check
    _
  $region43: #{_lambda_.1} parent=0 // pred_check_branch
    %41 = sbr.rel (0) target = $region45
  $region44: #{_lambda_.1} parent=0 // pred_region
    _
  $region45: #{_lambda_.1} parent=0 // pred_fallthru
    _
  // Predicated region
  $region46: #{_lambda_.1} parent=0 // pred_check
    _
  $region47: #{_lambda_.1} parent=0 // pred_check_branch
    %43 = sbr.rel (0) target = $region49
  $region48: #{_lambda_.1} parent=0 // pred_region
    _
  $region49: #{_lambda_.1} parent=0 // pred_fallthru
    _
  // Predicated region
  $region50: #{_lambda_.1} parent=0 // pred_check
    _
  $region51: #{_lambda_.1} parent=0 // pred_check_branch
    %45 = sbr.rel (0) target = $region53
  $region52: #{_lambda_.1} parent=0 // pred_region
    _
  $region53: #{_lambda_.1} parent=0 // pred_fallthru
    _
  // Predicated region
  $region54: #{_lambda_.1} parent=0 // pred_check
    _
  $region55: #{_lambda_.1} parent=0 // pred_check_branch
    %47 = sbr.rel (0) target = $region57
  $region56: #{_lambda_.1} parent=0 // pred_region
    _
  $region57: #{_lambda_.1} parent=0 // pred_fallthru
    _
  // Predicated region
  $region58: #{_lambda_.1} parent=0 // pred_check
    _
  $region59: #{_lambda_.1} parent=0 // pred_check_branch
    %49 = sbr.rel (0) target = $region61
  $region60: #{_lambda_.1} parent=0 // pred_region
    _
  $region61: #{_lambda_.1} parent=0 // pred_fallthru
    _
  %v51 = vld [vmem:[%s2] sm:$0x3]
  %vm52 = vcmask 84992
  %53 = vst.msk [vmem:[#allocation3] sm:$0xf] %vm52, 0
  %vm54 = vcmask 765592
  %55 = vst.msk [vmem:[#allocation3 + $0x4] sm:$0xf] %vm54, 0
  %v56 = vld [vmem:[%s0] sm:$0xff]
  %v57 = vld [vmem:[%s0 + $0x8] sm:$0xff]
  %v58 = vld [vmem:[%s0 + $0x10] sm:$0xff]
  %v59 = vld [vmem:[%s0 + $0x18] sm:$0xf]
  %v60 = vld [vmem:[%s1] sm:$0x7f]
  %v61 = vld [vmem:[%s5] sm:$0xf]
  %v62 = vld [vmem:[%s6] sm:$0xf]
  %67 = vst [vmem:[#allocation1] ss:$2 sm:$0xff] %v56
  %s68 = scalar_lea.vmem [#allocation1], 16
  %69 = vst [vmem:[%s68] ss:$2 sm:$0xff] %v57
  %s70 = scalar_lea.vmem [#allocation1], 32
  %71 = vst [vmem:[%s70] ss:$2 sm:$0xff] %v58
  %s72 = scalar_lea.vmem [#allocation1], 48
  %73 = vst [vmem:[%s72] ss:$2 sm:$0xff] %v59
  %v74 = vld.sshfl [vmem:[#allocation1] sm:$0xff pattern:$0x75316420]
  %v75 = vld.sshfl [vmem:[#allocation1 + $0x8] sm:$0xff pattern:$0x75316420]
  %v76 = vld.sshfl [vmem:[#allocation1 + $0x10] sm:$0xff pattern:$0x75316420]
  %v77 = vld.sshfl [vmem:[#allocation1 + $0x18] sm:$0xff pattern:$0x75316420]
  %v78 = vld.sshfl [vmem:[#allocation1 + $0x20] sm:$0xff pattern:$0x75316420]
  %v79 = vld.sshfl [vmem:[#allocation1 + $0x28] sm:$0xff pattern:$0x75316420]
  %v80 = vld.sshfl [vmem:[#allocation1 + $0x30] sm:$0xff pattern:$0x75316420]
  %vm88 = vcmask 1043456
  %v89 = vsel %vm88, %v74, 0.0
  %v90 = vsel %vm88, %v75, 0.0
  %v91 = vadd.f32 %v89, %v90
  %v92 = vsel %vm88, %v76, 0.0
  %v93 = vadd.f32 %v91, %v92
  %v94 = vsel %vm88, %v77, 0.0
  %v95 = vadd.f32 %v93, %v94
  %v96 = vsel %vm88, %v78, 0.0
  %v97 = vadd.f32 %v95, %v96
  %v98 = vsel %vm88, %v79, 0.0
  %v99 = vadd.f32 %v97, %v98
  %vm100 = vcmask 257024
  %v101 = vsel %vm100, %v80, 0.0
  %v102 = vadd.f32 %v99, %v101
  %103 = vadd.xlane.f32.xlu0 %v102
  %v104 = vpop.xlane.xlu0 %103
  %v105 = vmul.f32 %v104, 0.001953125
  %v108 = vunpack.c.l.s4 839922192
  %v109 = vunpack.c.0.s8 %v108
  %v110 = vperm.slane %v105, %v109
  %v112 = vsub.f32 %v56, %v110
  %v113 = vsub.f32 %v57, %v110
  %v114 = vsub.f32 %v58, %v110
  %v115 = vsub.f32 %v59, %v110
  %v117 = vperm.slane %v60, 0
  %v118 = vperm.slane %v60, 1
  %v119 = vperm.slane %v60, 2
  %v120 = vperm.slane %v60, 3
  %v121 = vperm.slane %v60, 4
  %v122 = vperm.slane %v60, 5
  %v123 = vperm.slane %v60, 6
  %v125 = vrot.slane %v118, 4
  %v126 = vrot.slane %v120, 4
  %v127 = vrot.slane %v122, 4
  %v128 = vsel %vm88, %v117, %v125
  %v129 = vsel %vm88, %v119, %v126
  %v130 = vsel %vm88, %v121, %v127
  %v134 = vmul.f32 %v112, %v128
  %v135 = vmul.f32 %v113, %v129
  %v136 = vmul.f32 %v114, %v130
  %v137 = vmul.f32 %v115, %v123
  %v138 = vmul.f32 %v134, %v134
  %v139 = vmul.f32 %v135, %v135
  %v140 = vmul.f32 %v136, %v136
  %v141 = vmul.f32 %v137, %v137
  %146 = vst [vmem:[#allocation1] ss:$2 sm:$0xff] %v138
  %s147 = scalar_lea.vmem [#allocation1], 16
  %148 = vst [vmem:[%s147] ss:$2 sm:$0xff] %v139
  %s149 = scalar_lea.vmem [#allocation1], 32
  %150 = vst [vmem:[%s149] ss:$2 sm:$0xff] %v140
  %s151 = scalar_lea.vmem [#allocation1], 48
  %152 = vst [vmem:[%s151] ss:$2 sm:$0xff] %v141
  %v153 = vld.sshfl [vmem:[#allocation1] sm:$0xff pattern:$0x75316420]
  %v154 = vld.sshfl [vmem:[#allocation1 + $0x8] sm:$0xff pattern:$0x75316420]
  %v155 = vld.sshfl [vmem:[#allocation1 + $0x10] sm:$0xff pattern:$0x75316420]
  %v156 = vld.sshfl [vmem:[#allocation1 + $0x18] sm:$0xff pattern:$0x75316420]
  %v157 = vld.sshfl [vmem:[#allocation1 + $0x20] sm:$0xff pattern:$0x75316420]
  %v158 = vld.sshfl [vmem:[#allocation1 + $0x28] sm:$0xff pattern:$0x75316420]
  %v159 = vld.sshfl [vmem:[#allocation1 + $0x30] sm:$0xff pattern:$0x75316420]
  %v167 = vsel %vm88, %v153, 0.0
  %v168 = vsel %vm88, %v154, 0.0
  %v169 = vadd.f32 %v167, %v168
  %v170 = vsel %vm88, %v155, 0.0
  %v171 = vadd.f32 %v169, %v170
  %v172 = vsel %vm88, %v156, 0.0
  %v173 = vadd.f32 %v171, %v172
  %v174 = vsel %vm88, %v157, 0.0
  %v175 = vadd.f32 %v173, %v174
  %v176 = vsel %vm88, %v158, 0.0
  %v177 = vadd.f32 %v175, %v176
  %v178 = vsel %vm100, %v159, 0.0
  %v179 = vadd.f32 %v177, %v178
  %180 = vadd.xlane.f32.xlu0 %v179
  %v181 = vpop.xlane.xlu0 %180
  %v182 = vmul.f32 %v181, 0.001953125
  %v183 = vadd.f32 %v182, 1e-05
  %v184 = vrsqrt.pop %v183
  %v185 = vmul.f32 %v184, %v183
  %v186 = vmul.f32 %v185, %v184
  %v187 = vmul.f32 0.5, %v186
  %v188 = vsub.f32 1.5, %v187
  %v189 = vmul.f32 %v184, %v188
  %vm190 = vweird.f32 %v183
  %vm191 = vweird.f32 %v184
  %vm192 = vmor %vm190, %vm191
  %v193 = vsel %vm192, %v184, %v189
  %v196 = vunpack.c.l.s4 839922192
  %v197 = vunpack.c.0.s8 %v196
  %v198 = vperm.slane %v193, %v197
  %v200 = vmul.f32 %v134, %v198
  %v201 = vmul.f32 %v135, %v198
  %v202 = vmul.f32 %v136, %v198
  %v203 = vmul.f32 %v137, %v198
  %205 = vset.pattern.permute.xlu0 0
  %206 = vperm.xlu0 %205, %v61
  %v207 = vpop.permute.xlu0 %206
  %v209 = vunpack.c.l.s4 839922192
  %v210 = vunpack.c.0.s8 %v209
  %v211 = vperm.slane %v207, %v210
  %v213 = vmul.f32 %v200, %v211
  %v214 = vmul.f32 %v201, %v211
  %v215 = vmul.f32 %v202, %v211
  %v216 = vmul.f32 %v203, %v211
  %218 = vset.pattern.permute.xlu0 0
  %219 = vperm.xlu0 %218, %v62
  %v220 = vpop.permute.xlu0 %219
  %v222 = vunpack.c.l.s4 839922192
  %v223 = vunpack.c.0.s8 %v222
  %v224 = vperm.slane %v220, %v223
  %v226 = vadd.f32 %v213, %v224
  %v227 = vadd.f32 %v214, %v224
  %v228 = vadd.f32 %v215, %v224
  %v229 = vadd.f32 %v216, %v224
  %vm230 = vcmp.ge.f32.partialorder %v226, 0.0
  %vm231 = vcmp.ge.f32.partialorder %v227, 0.0
  %vm232 = vcmp.ge.f32.partialorder %v228, 0.0
  %vm233 = vcmp.ge.f32.partialorder %v229, 0.0
  %v234 = vmul.f32 %v226, 0.1
  %v235 = vmul.f32 %v227, 0.1
  %v236 = vmul.f32 %v228, 0.1
  %v237 = vmul.f32 %v229, 0.1
  %v238 = vsel %vm230, %v226, %v234
  %v239 = vsel %vm231, %v227, %v235
  %v240 = vsel %vm232, %v228, %v236
  %v241 = vsel %vm233, %v229, %v237
  %v242 = vmul.f32 %v238, %v128
  %v243 = vmul.f32 %v239, %v129
  %v244 = vmul.f32 %v240, %v130
  %v245 = vmul.f32 %v241, %v123
  %250 = vst [vmem:[#allocation1] ss:$2 sm:$0xff] %v242
  %s251 = scalar_lea.vmem [#allocation1], 16
  %252 = vst [vmem:[%s251] ss:$2 sm:$0xff] %v243
  %s253 = scalar_lea.vmem [#allocation1], 32
  %254 = vst [vmem:[%s253] ss:$2 sm:$0xff] %v244
  %s255 = scalar_lea.vmem [#allocation1], 48
  %256 = vst [vmem:[%s255] ss:$2 sm:$0xff] %v245
  %v257 = vld.sshfl [vmem:[#allocation1] sm:$0xff pattern:$0x75316420]
  %v258 = vld.sshfl [vmem:[#allocation1 + $0x8] sm:$0xff pattern:$0x75316420]
  %v259 = vld.sshfl [vmem:[#allocation1 + $0x10] sm:$0xff pattern:$0x75316420]
  %v260 = vld.sshfl [vmem:[#allocation1 + $0x18] sm:$0xff pattern:$0x75316420]
  %v261 = vld.sshfl [vmem:[#allocation1 + $0x20] sm:$0xff pattern:$0x75316420]
  %v262 = vld.sshfl [vmem:[#allocation1 + $0x28] sm:$0xff pattern:$0x75316420]
  %v263 = vld.sshfl [vmem:[#allocation1 + $0x30] sm:$0xff pattern:$0x75316420]
  %v271 = vpack.c.bf16 %v258, %v257
  %v272 = vpack.c.bf16 %v260, %v259
  %v273 = vpack.c.bf16 %v262, %v261
  %v274 = vpack.c.bf16 %v263, %v263
  %v279 = vrot.slane %v271, 2
  %v280 = vrot.slane %v272, 4
  %v281 = vrot.slane %v272, 6
  %v282 = vrot.slane %v273, 2
  %v283 = vrot.slane %v274, 4
  %v284 = vrot.slane %v274, 6
  %vm285 = vcmask 1041408
  %v288 = vsel %vm285, %v271, %v279
  %vm289 = vcmask 1045508
  %v292 = vsel %vm289, %v280, %v281
  %v293 = vsel %vm88, %v288, %v292
  %v296 = vsel %vm285, %v273, %v282
  %v299 = vsel %vm289, %v283, %v284
  %v300 = vsel %vm88, %v296, %v299
  %303 = vst [vmem:[#allocation2] sm:$0xff] %v293
  %vm304 = vcmask 1043458
  %vm305 = vmor %vm304, %vm285
  %vm306 = vcmask 259076
  %vm307 = vmor %vm306, %vm305
  %308 = vst.msk [vmem:[#allocation2 + $0x8] sm:$0x3f] %vm307, %v300
  %v309 = vld [vmem:[#allocation2 + $0x8] sm:$0x3f]
  %311 = vst [vmem:[#allocation1] ss:$2 sm:$0xff] %v309
  %v312 = vld.sshfl [vmem:[#allocation1] sm:$0xff pattern:$0x75643120]
  %v314 = vld.sshfl [vmem:[#allocation1 + $0x8] sm:$0xff pattern:$0x75643120]
  %316 = vrot.lane.b32.xlu0 %v312, 51
  %v317 = vpop.permute.xlu0 %316
  %318 = vrot.lane.b32.xlu0 %v314, 51
  %v319 = vpop.permute.xlu0 %318
  %v320 = vrot.slane %v317, 4
  %v321 = vrot.slane %v319, 4
  %vm322 = vcmask 1043456
  %v323 = vsel %vm322, %v320, %v321
  %vm324 = vcmask 416768
  %v325 = vsel %vm324, %v317, %v323
  %vm327 = vcmask 586756
  %vm328 = vmor %vm327, %vm285
  %329 = vst.msk [vmem:[#allocation4] sm:$0x33] %vm328, %v325
  %v330 = vld [vmem:[#allocation2 + $0x6] sm:$0xf]
  %s332 = scalar_lea.vmem [#allocation1], 1
  %333 = vst [vmem:[%s332] ss:$2 sm:$0xff] %v330
  %v334 = vld.sshfl [vmem:[#allocation1] sm:$0xff pattern:$0x75643120]
  %336 = vrot.lane.b32.xlu0 %v334, 122
  %v337 = vpop.permute.xlu0 %336
  %v338 = vrot.slane %v337, 4
  %vm339 = vcmask 998400
  %v340 = vsel %vm339, %v337, %v338
  %vm342 = vcmask 588806
  %vm343 = vmor %vm342, %vm304
  %344 = vst.msk [vmem:[#allocation4] sm:$0xcc] %vm343, %v340
  %v345 = vld [vmem:[#allocation2 + $0x8] sm:$0x3f]
  %347 = vst [vmem:[#allocation1] ss:$2 sm:$0xff] %v345
  %v348 = vld.sshfl [vmem:[#allocation1] sm:$0xff pattern:$0x75643120]
  %v350 = vld.sshfl [vmem:[#allocation1 + $0x8] sm:$0xff pattern:$0x75643120]
  %352 = vrot.lane.b32.xlu0 %v348, 50
  %v353 = vpop.permute.xlu0 %352
  %354 = vrot.lane.b32.xlu0 %v350, 50
  %v355 = vpop.permute.xlu0 %354
  %v356 = vrot.slane %v353, 4
  %v357 = vrot.slane %v355, 4
  %v358 = vsel %vm322, %v356, %v357
  %vm359 = vcmask 408576
  %v360 = vsel %vm359, %v353, %v358
  %362 = vst.msk [vmem:[#allocation4 + $0x8] sm:$0x33] %vm328, %v360
  %v363 = vld [vmem:[#allocation2 + $0x2] sm:$0x3f]
  %s365 = scalar_lea.vmem [#allocation1], 1
  %366 = vst [vmem:[%s365] ss:$2 sm:$0xff] %v363
  %v367 = vld.sshfl [vmem:[#allocation1] sm:$0xff pattern:$0x75643120]
  %v369 = vld.sshfl [vmem:[#allocation1 + $0x8] sm:$0xff pattern:$0x75643120]
  %371 = vrot.lane.b32.xlu0 %v367, 57
  %v372 = vpop.permute.xlu0 %371
  %373 = vrot.lane.b32.xlu0 %v369, 57
  %v374 = vpop.permute.xlu0 %373
  %v375 = vrot.slane %v372, 4
  %v376 = vrot.slane %v374, 4
  %v377 = vsel %vm322, %v375, %v376
  %vm378 = vcmask 465920
  %v379 = vsel %vm378, %v372, %v377
  %381 = vst.msk [vmem:[#allocation4 + $0x8] sm:$0xcc] %vm343, %v379
  %v382 = vld [vmem:[#allocation2] sm:$0xf]
  %384 = vst [vmem:[#allocation1] ss:$2 sm:$0xff] %v382
  %v385 = vld.sshfl [vmem:[#allocation1] sm:$0xff pattern:$0x75643120]
  %387 = vst.msk [vmem:[#allocation4 + $0x10] sm:$0x33] %vm328, %v385
  %v388 = vld [vmem:[#allocation2 + $0x2] sm:$0x3f]
  %s390 = scalar_lea.vmem [#allocation1], 1
  %391 = vst [vmem:[%s390] ss:$2 sm:$0xff] %v388
  %v392 = vld.sshfl [vmem:[#allocation1] sm:$0xff pattern:$0x75643120]
  %v394 = vld.sshfl [vmem:[#allocation1 + $0x8] sm:$0xff pattern:$0x75643120]
  %396 = vrot.lane.b32.xlu0 %v392, 56
  %v397 = vpop.permute.xlu0 %396
  %398 = vrot.lane.b32.xlu0 %v394, 56
  %v399 = vpop.permute.xlu0 %398
  %v400 = vrot.slane %v397, 4
  %v401 = vrot.slane %v399, 4
  %v402 = vsel %vm322, %v400, %v401
  %vm403 = vcmask 457728
  %v404 = vsel %vm403, %v397, %v402
  %406 = vst.msk [vmem:[#allocation4 + $0x10] sm:$0xcc] %vm343, %v404
  %v407 = vld [vmem:[#allocation2 + $0x8] sm:$0x3f]
  %409 = vst [vmem:[#allocation1] ss:$2 sm:$0xff] %v407
  %v410 = vld.sshfl [vmem:[#allocation1] sm:$0xff pattern:$0x75643120]
  %v412 = vld.sshfl [vmem:[#allocation1 + $0x8] sm:$0xff pattern:$0x75643120]
  %414 = vrot.lane.b32.xlu0 %v410, 41
  %v415 = vpop.permute.xlu0 %414
  %416 = vrot.lane.b32.xlu0 %v412, 41
  %v417 = vpop.permute.xlu0 %416
  %v418 = vrot.slane %v415, 4
  %v419 = vrot.slane %v417, 4
  %v420 = vsel %vm322, %v418, %v419
  %vm421 = vcmask 334848
  %v422 = vsel %vm421, %v415, %v420
  %424 = vst.msk [vmem:[#allocation4 + $0x18] sm:$0x33] %vm328, %v422
  %v425 = vld [vmem:[#allocation2 + $0x6] sm:$0xf]
  %s427 = scalar_lea.vmem [#allocation1], 1
  %428 = vst [vmem:[%s427] ss:$2 sm:$0xff] %v425
  %v429 = vld.sshfl [vmem:[#allocation1] sm:$0xff pattern:$0x75643120]
  %431 = vrot.lane.b32.xlu0 %v429, 112
  %v432 = vpop.permute.xlu0 %431
  %v433 = vrot.slane %v432, 4
  %vm434 = vcmask 916480
  %v435 = vsel %vm434, %v432, %v433
  %437 = vst.msk [vmem:[#allocation4 + $0x18] sm:$0xcc] %vm343, %v435
  %v438 = vld [vmem:[#allocation2 + $0x8] sm:$0x3f]
  %440 = vst [vmem:[#allocation1] ss:$2 sm:$0xff] %v438
  %v441 = vld.sshfl [vmem:[#allocation1] sm:$0xff pattern:$0x75643120]
  %v443 = vld.sshfl [vmem:[#allocation1 + $0x8] sm:$0xff pattern:$0x75643120]
  %445 = vrot.lane.b32.xlu0 %v441, 40
  %v446 = vpop.permute.xlu0 %445
  %447 = vrot.lane.b32.xlu0 %v443, 40
  %v448 = vpop.permute.xlu0 %447
  %v449 = vrot.slane %v446, 4
  %v450 = vrot.slane %v448, 4
  %v451 = vsel %vm322, %v449, %v450
  %vm452 = vcmask 326656
  %v453 = vsel %vm452, %v446, %v451
  %455 = vst.msk [vmem:[#allocation4 + $0x20] sm:$0x33] %vm328, %v453
  %v456 = vld [vmem:[%s3] sm:$0xf]
  %v457 = vld [vmem:[%s3 + $0x4] sm:$0xf]
  %v458 = vld [vmem:[#allocation4] sm:$0xff]
  %v459 = vld [vmem:[#allocation4 + $0x8] sm:$0xff]
  %v460 = vld [vmem:[#allocation4 + $0x10] sm:$0xff]
  %v461 = vld [vmem:[#allocation4 + $0x18] sm:$0xff]
  %v462 = vld [vmem:[#allocation4 + $0x20] sm:$0x33]
  %v465 = vunpack.c.l.b16 %v456
  %v466 = vunpack.c.l.b16 %v457
  %v467 = vpack.c.b16 %v466, %v465
  %v473 = vunpack.c.l.b16 %v458
  %v474 = vunpack.c.h.b16 %v458
  %v475 = vunpack.c.l.b16 %v459
  %v476 = vunpack.c.h.b16 %v459
  %v477 = vunpack.c.l.b16 %v460
  %v478 = vunpack.c.h.b16 %v460
  %v479 = vunpack.c.l.b16 %v461
  %v480 = vunpack.c.h.b16 %v461
  %v481 = vunpack.c.l.b16 %v462
  %v482 = vunpack.c.h.b16 %v462
  %v483 = vpack.c.b16 %v475, %v473
  %v484 = vpack.c.b16 %v476, %v474
  %v485 = vpack.c.b16 %v479, %v477
  %v486 = vpack.c.b16 %v480, %v478
  %v487 = vpack.c.b16 %v481, %v481
  %v488 = vpack.c.b16 %v482, %v482
  %vm493 = vcmask 293888
  %v495 = vsel %vm493, %v467, 0
  %v498 = vsel %vm285, %v487, 0
  %v501 = vsel %vm285, %v488, 0
  %503 = vmatpush.bf16.msra.mxu0 0
  %504 = vmatpush.bf16.msra.mxu0 0
  %505 = vmatpush.bf16.msra.mxu0 0
  %506 = vmatpush.bf16.msra.mxu0 0
  %507 = vmatpush.bf16.msra.mxu0 0
  %508 = vmatpush.bf16.msra.mxu0 %v498
  %509 = vmatpush.bf16.msra.mxu0 %v485
  %510 = vmatpush.bf16.msra.mxu0 %v483
  %511 = vmatmul.bf16.gmra.mxu0 %v495
  %v512 = vpop.f32.mrf.mxu0
  %v513 = vadd.f32 0.0, %v512
  %v514 = vpop.f32.mrf.mxu0
  %v515 = vadd.f32 0.0, %v514
  %516 = vdwg.mxu0
  %517 = vmatpush.bf16.msra.mxu0 0
  %518 = vmatpush.bf16.msra.mxu0 0
  %519 = vmatpush.bf16.msra.mxu0 0
  %520 = vmatpush.bf16.msra.mxu0 0
  %521 = vmatpush.bf16.msra.mxu0 0
  %522 = vmatpush.bf16.msra.mxu0 %v501
  %523 = vmatpush.bf16.msra.mxu0 %v486
  %524 = vmatpush.bf16.msra.mxu0 %v484
  %525 = vmatmul.bf16.gmra.mxu0 %v495
  %v526 = vpop.f32.mrf.mxu0
  %v527 = vadd.f32 0.0, %v526
  %v528 = vpop.f32.mrf.mxu0
  %v529 = vadd.f32 0.0, %v528
  %530 = vdwg.mxu0
  %v531 = vld [vmem:[%s7] sm:$0xff]
  %v532 = vld [vmem:[%s8] sm:$0xff]
  %v534 = vperm.slane %v51, 0
  %v535 = vperm.slane %v51, 1
  %v538 = vmul.f32 %v513, %v534
  %v539 = vmul.f32 %v527, %v535
  %vm540 = vcmask 588800
  %v541 = vsel %vm540, %v539, 0.0
  %v542 = vadd.f32 %v538, %v541
  %543 = vadd.xlane.f32.xlu0 %v542
  %v544 = vpop.xlane.xlu0 %543
  %v545 = vmul.f32 %v544, 0.0078125
  %v546 = vsub.f32 %v538, %v545
  %v547 = vsub.f32 %v539, %v545
  %v548 = vmul.f32 %v546, %v534
  %v549 = vmul.f32 %v547, %v535
  %v550 = vmul.f32 %v548, %v548
  %v551 = vmul.f32 %v549, %v549
  %v552 = vsel %vm540, %v551, 0.0
  %v553 = vadd.f32 %v550, %v552
  %554 = vadd.xlane.f32.xlu0 %v553
  %v555 = vpop.xlane.xlu0 %554
  %v556 = vmul.f32 %v555, 0.0078125
  %v557 = vadd.f32 %v556, 1e-05
  %v558 = vrsqrt.pop %v557
  %v559 = vmul.f32 %v558, %v557
  %v560 = vmul.f32 %v559, %v558
  %v561 = vmul.f32 0.5, %v560
  %v562 = vsub.f32 1.5, %v561
  %v563 = vmul.f32 %v558, %v562
  %vm564 = vweird.f32 %v557
  %vm565 = vweird.f32 %v558
  %vm566 = vmor %vm564, %vm565
  %v567 = vsel %vm566, %v558, %v563
  %v568 = vmul.f32 %v548, %v567
  %v569 = vmul.f32 %v549, %v567
  %571 = vset.pattern.permute.xlu0 0
  %572 = vperm.xlu0 %571, %v531
  %v573 = vpop.permute.xlu0 %572
  %v575 = vmul.f32 %v568, %v573
  %v576 = vmul.f32 %v569, %v573
  %578 = vset.pattern.permute.xlu0 0
  %579 = vperm.xlu0 %578, %v532
  %v580 = vpop.permute.xlu0 %579
  %v582 = vadd.f32 %v575, %v580
  %v583 = vadd.f32 %v576, %v580
  %vm584 = vcmp.ge.f32.partialorder %v582, 0.0
  %vm585 = vcmp.ge.f32.partialorder %v583, 0.0
  %v586 = vmul.f32 %v582, 0.1
  %v587 = vmul.f32 %v583, 0.1
  %v588 = vsel %vm584, %v582, %v586
  %v589 = vsel %vm585, %v583, %v587
  %v590 = vmul.f32 %v588, %v534
  %v591 = vmul.f32 %v589, %v535
  %v592 = vpack.c.bf16 %v591, %v590
  %594 = vrot.lane.b32.xlu0 %v592, 11
  %v595 = vpop.permute.xlu0 %594
  %v596 = vrot.slane %v595, 4
  %vm597 = vcmask 89088
  %v598 = vsel %vm597, %v596, %v595
  %vm600 = vcmask 1043544
  %vm601 = vcmask 678916
  %vm602 = vmor %vm601, %vm600
  %603 = vst.msk [vmem:[#allocation3] sm:$0xff] %vm602, %v598
  %v604 = vld [vmem:[#allocation3] sm:$0xff]
  %vm605 = vcmask 588804
  %vm606 = vmor %vm605, %vm88
  %607 = vst.msk [vmem:[#allocation4] sm:$0xff] %vm606, %v604
  %v608 = vld [vmem:[#allocation3] sm:$0xff]
  %610 = vrot.lane.b32.xlu0 %v608, 127
  %v611 = vpop.permute.xlu0 %610
  %v612 = vrot.slane %v611, 4
  %vm613 = vcmask 1039360
  %v614 = vsel %vm613, %v611, %v612
  %616 = vst.msk [vmem:[#allocation4 + $0x8] sm:$0xff] %vm606, %v614
  %v617 = vld [vmem:[#allocation3] sm:$0xff]
  %619 = vrot.lane.b32.xlu0 %v617, 126
  %v620 = vpop.permute.xlu0 %619
  %v621 = vrot.slane %v620, 4
  %vm622 = vcmask 1031168
  %v623 = vsel %vm622, %v620, %v621
  %625 = vst.msk [vmem:[#allocation4 + $0x10] sm:$0xff] %vm606, %v623
  %v626 = vld [vmem:[#allocation3] sm:$0xff]
  %628 = vrot.lane.b32.xlu0 %v626, 118
  %v629 = vpop.permute.xlu0 %628
  %v630 = vrot.slane %v629, 4
  %vm631 = vcmask 965632
  %v632 = vsel %vm631, %v629, %v630
  %634 = vst.msk [vmem:[#allocation4 + $0x18] sm:$0xff] %vm606, %v632
  %v635 = vld [vmem:[#allocation3] sm:$0xff]
  %637 = vrot.lane.b32.xlu0 %v635, 117
  %v638 = vpop.permute.xlu0 %637
  %v639 = vrot.slane %v638, 4
  %vm640 = vcmask 957440
  %v641 = vsel %vm640, %v638, %v639
  %643 = vst.msk [vmem:[#allocation4 + $0x20] sm:$0xff] %vm606, %v641
  %v644 = vld [vmem:[#allocation3] sm:$0xff]
  %646 = vrot.lane.b32.xlu0 %v644, 116
  %v647 = vpop.permute.xlu0 %646
  %v648 = vrot.slane %v647, 4
  %vm649 = vcmask 949248
  %v650 = vsel %vm649, %v647, %v648
  %652 = vst.msk [vmem:[#allocation4 + $0x28] sm:$0xff] %vm606, %v650
  %v653 = vld [vmem:[#allocation3] sm:$0xff]
  %655 = vrot.lane.b32.xlu0 %v653, 108
  %v656 = vpop.permute.xlu0 %655
  %v657 = vrot.slane %v656, 4
  %vm658 = vcmask 883712
  %v659 = vsel %vm658, %v656, %v657
  %661 = vst.msk [vmem:[#allocation4 + $0x30] sm:$0xff] %vm606, %v659
  %v662 = vld [vmem:[#allocation3] sm:$0xff]
  %664 = vrot.lane.b32.xlu0 %v662, 107
  %v665 = vpop.permute.xlu0 %664
  %v666 = vrot.slane %v665, 4
  %vm667 = vcmask 875520
  %v668 = vsel %vm667, %v665, %v666
  %670 = vst.msk [vmem:[#allocation4 + $0x38] sm:$0xff] %vm606, %v668
  %v671 = vld [vmem:[#allocation3] sm:$0xff]
  %673 = vrot.lane.b32.xlu0 %v671, 106
  %v674 = vpop.permute.xlu0 %673
  %v675 = vrot.slane %v674, 4
  %vm676 = vcmask 867328
  %v677 = vsel %vm676, %v674, %v675
  %679 = vst.msk [vmem:[#allocation4 + $0x40] sm:$0xff] %vm606, %v677
  %v680 = vld [vmem:[%s4] sm:$0xf]
  %v681 = vld [vmem:[#allocation4] sm:$0xff]
  %v682 = vld [vmem:[#allocation4 + $0x8] sm:$0xff]
  %v683 = vld [vmem:[#allocation4 + $0x10] sm:$0xff]
  %v684 = vld [vmem:[#allocation4 + $0x18] sm:$0xff]
  %v685 = vld [vmem:[#allocation4 + $0x20] sm:$0xff]
  %v686 = vld [vmem:[#allocation4 + $0x28] sm:$0xff]
  %v687 = vld [vmem:[#allocation4 + $0x30] sm:$0xff]
  %v688 = vld [vmem:[#allocation4 + $0x38] sm:$0xff]
  %v689 = vld [vmem:[#allocation4 + $0x40] sm:$0xff]
  %v699 = vunpack.c.l.b16 %v681
  %v700 = vunpack.c.h.b16 %v681
  %v701 = vunpack.c.l.b16 %v682
  %v702 = vunpack.c.h.b16 %v682
  %v703 = vunpack.c.l.b16 %v683
  %v704 = vunpack.c.h.b16 %v683
  %v705 = vunpack.c.l.b16 %v684
  %v706 = vunpack.c.h.b16 %v684
  %v707 = vunpack.c.l.b16 %v685
  %v708 = vunpack.c.h.b16 %v685
  %v709 = vunpack.c.l.b16 %v686
  %v710 = vunpack.c.h.b16 %v686
  %v711 = vunpack.c.l.b16 %v687
  %v712 = vunpack.c.h.b16 %v687
  %v713 = vunpack.c.l.b16 %v688
  %v714 = vunpack.c.h.b16 %v688
  %v715 = vunpack.c.l.b16 %v689
  %v716 = vunpack.c.h.b16 %v689
  %v717 = vpack.c.b16 %v701, %v699
  %v718 = vpack.c.b16 %v702, %v700
  %v719 = vpack.c.b16 %v705, %v703
  %v720 = vpack.c.b16 %v706, %v704
  %v721 = vpack.c.b16 %v709, %v707
  %v722 = vpack.c.b16 %v710, %v708
  %v723 = vpack.c.b16 %v713, %v711
  %v724 = vpack.c.b16 %v714, %v712
  %v725 = vpack.c.b16 %v715, %v715
  %v726 = vpack.c.b16 %v716, %v716
  %v736 = vsel %vm540, %v680, 0
  %v739 = vsel %vm88, %v725, 0
  %v742 = vsel %vm88, %v726, 0
  %744 = vmatpush.bf16.msra.mxu0 0
  %745 = vmatpush.bf16.msra.mxu0 0
  %746 = vmatpush.bf16.msra.mxu0 0
  %747 = vmatpush.bf16.msra.mxu0 %v739
  %748 = vmatpush.bf16.msra.mxu0 %v723
  %749 = vmatpush.bf16.msra.mxu0 %v721
  %750 = vmatpush.bf16.msra.mxu0 %v719
  %751 = vmatpush.bf16.msra.mxu0 %v717
  %752 = vmatmul.bf16.gmra.mxu0 %v736
  %v753 = vpop.f32.mrf.mxu0
  %v754 = vadd.f32 %v515, %v753
  %v755 = vpop.f32.mrf.mxu0
  %756 = vdwg.mxu0
  %757 = vmatpush.bf16.msra.mxu0 0
  %758 = vmatpush.bf16.msra.mxu0 0
  %759 = vmatpush.bf16.msra.mxu0 0
  %760 = vmatpush.bf16.msra.mxu0 %v742
  %761 = vmatpush.bf16.msra.mxu0 %v724
  %762 = vmatpush.bf16.msra.mxu0 %v722
  %763 = vmatpush.bf16.msra.mxu0 %v720
  %764 = vmatpush.bf16.msra.mxu0 %v718
  %765 = vmatmul.bf16.gmra.mxu0 %v736
  %v766 = vpop.f32.mrf.mxu0
  %v767 = vadd.f32 %v529, %v766
  %v768 = vpop.f32.mrf.mxu0
  %769 = vdwg.mxu0
  %v770 = vmul.f32 %v754, %v534
  %v771 = vmul.f32 %v767, %v535
  %v772 = vld [vmem:[%s11] sm:$0xff]
  %v773 = vld [vmem:[%s12] sm:$0xff]
  %v774 = vsel %vm540, %v771, 0.0
  %v775 = vadd.f32 %v770, %v774
  %776 = vadd.xlane.f32.xlu0 %v775
  %v777 = vpop.xlane.xlu0 %776
  %v778 = vmul.f32 %v777, 0.0078125
  %v779 = vsub.f32 %v770, %v778
  %v780 = vsub.f32 %v771, %v778
  %v781 = vmul.f32 %v779, %v534
  %v782 = vmul.f32 %v780, %v535
  %v783 = vmul.f32 %v781, %v781
  %v784 = vmul.f32 %v782, %v782
  %v785 = vsel %vm540, %v784, 0.0
  %v786 = vadd.f32 %v783, %v785
  %787 = vadd.xlane.f32.xlu0 %v786
  %v788 = vpop.xlane.xlu0 %787
  %v789 = vmul.f32 %v788, 0.0078125
  %v790 = vadd.f32 %v789, 1e-05
  %v791 = vrsqrt.pop %v790
  %v792 = vmul.f32 %v791, %v790
  %v793 = vmul.f32 %v792, %v791
  %v794 = vmul.f32 0.5, %v793
  %v795 = vsub.f32 1.5, %v794
  %v796 = vmul.f32 %v791, %v795
  %vm797 = vweird.f32 %v790
  %vm798 = vweird.f32 %v791
  %vm799 = vmor %vm797, %vm798
  %v800 = vsel %vm799, %v791, %v796
  %v801 = vmul.f32 %v781, %v800
  %v802 = vmul.f32 %v782, %v800
  %804 = vset.pattern.permute.xlu0 0
  %805 = vperm.xlu0 %804, %v772
  %v806 = vpop.permute.xlu0 %805
  %v808 = vmul.f32 %v801, %v806
  %v809 = vmul.f32 %v802, %v806
  %811 = vset.pattern.permute.xlu0 0
  %812 = vperm.xlu0 %811, %v773
  %v813 = vpop.permute.xlu0 %812
  %v815 = vadd.f32 %v808, %v813
  %v816 = vadd.f32 %v809, %v813
  %vm817 = vcmp.ge.f32.partialorder %v815, 0.0
  %vm818 = vcmp.ge.f32.partialorder %v816, 0.0
  %v819 = vmul.f32 %v815, 0.1
  %v820 = vmul.f32 %v816, 0.1
  %v821 = vsel %vm817, %v815, %v819
  %v822 = vsel %vm818, %v816, %v820
  %v823 = vmul.f32 %v821, %v534
  %v824 = vmul.f32 %v822, %v535
  %v825 = vpack.c.bf16 %v824, %v823
  %827 = vrot.lane.b32.xlu0 %v825, 11
  %v828 = vpop.permute.xlu0 %827
  %v829 = vrot.slane %v828, 4
  %v830 = vsel %vm597, %v829, %v828
  %832 = vst.msk [vmem:[#allocation3] sm:$0xff] %vm602, %v830
  %v833 = vld [vmem:[#allocation3] sm:$0xff]
  %834 = vst.msk [vmem:[#allocation4] sm:$0xff] %vm606, %v833
  %v835 = vld [vmem:[#allocation3] sm:$0xff]
  %837 = vrot.lane.b32.xlu0 %v835, 127
  %v838 = vpop.permute.xlu0 %837
  %v839 = vrot.slane %v838, 4
  %v840 = vsel %vm613, %v838, %v839
  %842 = vst.msk [vmem:[#allocation4 + $0x8] sm:$0xff] %vm606, %v840
  %v843 = vld [vmem:[#allocation3] sm:$0xff]
  %845 = vrot.lane.b32.xlu0 %v843, 126
  %v846 = vpop.permute.xlu0 %845
  %v847 = vrot.slane %v846, 4
  %v848 = vsel %vm622, %v846, %v847
  %850 = vst.msk [vmem:[#allocation4 + $0x10] sm:$0xff] %vm606, %v848
  %v851 = vld [vmem:[#allocation3] sm:$0xff]
  %853 = vrot.lane.b32.xlu0 %v851, 118
  %v854 = vpop.permute.xlu0 %853
  %v855 = vrot.slane %v854, 4
  %v856 = vsel %vm631, %v854, %v855
  %858 = vst.msk [vmem:[#allocation4 + $0x18] sm:$0xff] %vm606, %v856
  %v859 = vld [vmem:[#allocation3] sm:$0xff]
  %861 = vrot.lane.b32.xlu0 %v859, 117
  %v862 = vpop.permute.xlu0 %861
  %v863 = vrot.slane %v862, 4
  %v864 = vsel %vm640, %v862, %v863
  %866 = vst.msk [vmem:[#allocation4 + $0x20] sm:$0xff] %vm606, %v864
  %v867 = vld [vmem:[#allocation3] sm:$0xff]
  %869 = vrot.lane.b32.xlu0 %v867, 116
  %v870 = vpop.permute.xlu0 %869
  %v871 = vrot.slane %v870, 4
  %v872 = vsel %vm649, %v870, %v871
  %874 = vst.msk [vmem:[#allocation4 + $0x28] sm:$0xff] %vm606, %v872
  %v875 = vld [vmem:[#allocation3] sm:$0xff]
  %877 = vrot.lane.b32.xlu0 %v875, 108
  %v878 = vpop.permute.xlu0 %877
  %v879 = vrot.slane %v878, 4
  %v880 = vsel %vm658, %v878, %v879
  %882 = vst.msk [vmem:[#allocation4 + $0x30] sm:$0xff] %vm606, %v880
  %v883 = vld [vmem:[#allocation3] sm:$0xff]
  %885 = vrot.lane.b32.xlu0 %v883, 107
  %v886 = vpop.permute.xlu0 %885
  %v887 = vrot.slane %v886, 4
  %v888 = vsel %vm667, %v886, %v887
  %890 = vst.msk [vmem:[#allocation4 + $0x38] sm:$0xff] %vm606, %v888
  %v891 = vld [vmem:[#allocation3] sm:$0xff]
  %893 = vrot.lane.b32.xlu0 %v891, 106
  %v894 = vpop.permute.xlu0 %893
  %v895 = vrot.slane %v894, 4
  %v896 = vsel %vm676, %v894, %v895
  %898 = vst.msk [vmem:[#allocation4 + $0x40] sm:$0xff] %vm606, %v896
  %v899 = vld [vmem:[%s9] sm:$0xf]
  %v900 = vld [vmem:[#allocation4] sm:$0xff]
  %v901 = vld [vmem:[#allocation4 + $0x8] sm:$0xff]
  %v902 = vld [vmem:[#allocation4 + $0x10] sm:$0xff]
  %v903 = vld [vmem:[#allocation4 + $0x18] sm:$0xff]
  %v904 = vld [vmem:[#allocation4 + $0x20] sm:$0xff]
  %v905 = vld [vmem:[#allocation4 + $0x28] sm:$0xff]
  %v906 = vld [vmem:[#allocation4 + $0x30] sm:$0xff]
  %v907 = vld [vmem:[#allocation4 + $0x38] sm:$0xff]
  %v908 = vld [vmem:[#allocation4 + $0x40] sm:$0xff]
  %v918 = vunpack.c.l.b16 %v900
  %v919 = vunpack.c.h.b16 %v900
  %v920 = vunpack.c.l.b16 %v901
  %v921 = vunpack.c.h.b16 %v901
  %v922 = vunpack.c.l.b16 %v902
  %v923 = vunpack.c.h.b16 %v902
  %v924 = vunpack.c.l.b16 %v903
  %v925 = vunpack.c.h.b16 %v903
  %v926 = vunpack.c.l.b16 %v904
  %v927 = vunpack.c.h.b16 %v904
  %v928 = vunpack.c.l.b16 %v905
  %v929 = vunpack.c.h.b16 %v905
  %v930 = vunpack.c.l.b16 %v906
  %v931 = vunpack.c.h.b16 %v906
  %v932 = vunpack.c.l.b16 %v907
  %v933 = vunpack.c.h.b16 %v907
  %v934 = vunpack.c.l.b16 %v908
  %v935 = vunpack.c.h.b16 %v908
  %v936 = vpack.c.b16 %v920, %v918
  %v937 = vpack.c.b16 %v921, %v919
  %v938 = vpack.c.b16 %v924, %v922
  %v939 = vpack.c.b16 %v925, %v923
  %v940 = vpack.c.b16 %v928, %v926
  %v941 = vpack.c.b16 %v929, %v927
  %v942 = vpack.c.b16 %v932, %v930
  %v943 = vpack.c.b16 %v933, %v931
  %v944 = vpack.c.b16 %v934, %v934
  %v945 = vpack.c.b16 %v935, %v935
  %v955 = vsel %vm540, %v899, 0
  %v958 = vsel %vm88, %v944, 0
  %v961 = vsel %vm88, %v945, 0
  %963 = vmatpush.bf16.msra.mxu0 0
  %964 = vmatpush.bf16.msra.mxu0 0
  %965 = vmatpush.bf16.msra.mxu0 0
  %966 = vmatpush.bf16.msra.mxu0 %v958
  %967 = vmatpush.bf16.msra.mxu0 %v942
  %968 = vmatpush.bf16.msra.mxu0 %v940
  %969 = vmatpush.bf16.msra.mxu0 %v938
  %970 = vmatpush.bf16.msra.mxu0 %v936
  %971 = vmatmul.bf16.gmra.mxu0 %v955
  %v972 = vpop.f32.mrf.mxu0
  %v973 = vadd.f32 0.0, %v972
  %v974 = vpop.f32.mrf.mxu0
  %975 = vdwg.mxu0
  %976 = vmatpush.bf16.msra.mxu0 0
  %977 = vmatpush.bf16.msra.mxu0 0
  %978 = vmatpush.bf16.msra.mxu0 0
  %979 = vmatpush.bf16.msra.mxu0 %v961
  %980 = vmatpush.bf16.msra.mxu0 %v943
  %981 = vmatpush.bf16.msra.mxu0 %v941
  %982 = vmatpush.bf16.msra.mxu0 %v939
  %983 = vmatpush.bf16.msra.mxu0 %v937
  %984 = vmatmul.bf16.gmra.mxu0 %v955
  %v985 = vpop.f32.mrf.mxu0
  %v986 = vadd.f32 0.0, %v985
  %v987 = vpop.f32.mrf.mxu0
  %988 = vdwg.mxu0
  %v989 = vld [vmem:[%s13] sm:$0xff]
  %v990 = vld [vmem:[%s14] sm:$0xff]
  %v991 = vmul.f32 %v973, %v534
  %v992 = vmul.f32 %v986, %v535
  %v993 = vsel %vm540, %v992, 0.0
  %v994 = vadd.f32 %v991, %v993
  %995 = vadd.xlane.f32.xlu0 %v994
  %v996 = vpop.xlane.xlu0 %995
  %v997 = vmul.f32 %v996, 0.0078125
  %v998 = vsub.f32 %v991, %v997
  %v999 = vsub.f32 %v992, %v997
  %v1000 = vmul.f32 %v998, %v534
  %v1001 = vmul.f32 %v999, %v535
  %v1002 = vmul.f32 %v1000, %v1000
  %v1003 = vmul.f32 %v1001, %v1001
  %v1004 = vsel %vm540, %v1003, 0.0
  %v1005 = vadd.f32 %v1002, %v1004
  %1006 = vadd.xlane.f32.xlu0 %v1005
  %v1007 = vpop.xlane.xlu0 %1006
  %v1008 = vmul.f32 %v1007, 0.0078125
  %v1009 = vadd.f32 %v1008, 1e-05
  %v1010 = vrsqrt.pop %v1009
  %v1011 = vmul.f32 %v1010, %v1009
  %v1012 = vmul.f32 %v1011, %v1010
  %v1013 = vmul.f32 0.5, %v1012
  %v1014 = vsub.f32 1.5, %v1013
  %v1015 = vmul.f32 %v1010, %v1014
  %vm1016 = vweird.f32 %v1009
  %vm1017 = vweird.f32 %v1010
  %vm1018 = vmor %vm1016, %vm1017
  %v1019 = vsel %vm1018, %v1010, %v1015
  %v1020 = vmul.f32 %v1000, %v1019
  %v1021 = vmul.f32 %v1001, %v1019
  %1023 = vset.pattern.permute.xlu0 0
  %1024 = vperm.xlu0 %1023, %v989
  %v1025 = vpop.permute.xlu0 %1024
  %v1027 = vmul.f32 %v1020, %v1025
  %v1028 = vmul.f32 %v1021, %v1025
  %1030 = vset.pattern.permute.xlu0 0
  %1031 = vperm.xlu0 %1030, %v990
  %v1032 = vpop.permute.xlu0 %1031
  %v1034 = vadd.f32 %v1027, %v1032
  %v1035 = vadd.f32 %v1028, %v1032
  %vm1036 = vcmp.ge.f32.partialorder %v1034, 0.0
  %vm1037 = vcmp.ge.f32.partialorder %v1035, 0.0
  %v1038 = vmul.f32 %v1034, 0.1
  %v1039 = vmul.f32 %v1035, 0.1
  %v1040 = vsel %vm1036, %v1034, %v1038
  %v1041 = vsel %vm1037, %v1035, %v1039
  %v1042 = vmul.f32 %v1040, %v534
  %v1043 = vmul.f32 %v1041, %v535
  %v1044 = vpack.c.bf16 %v1043, %v1042
  %1046 = vrot.lane.b32.xlu0 %v1044, 11
  %v1047 = vpop.permute.xlu0 %1046
  %v1048 = vrot.slane %v1047, 4
  %v1049 = vsel %vm597, %v1048, %v1047
  %1051 = vst.msk [vmem:[#allocation3] sm:$0xff] %vm602, %v1049
  %v1052 = vld [vmem:[#allocation3] sm:$0xff]
  %1053 = vst.msk [vmem:[#allocation4] sm:$0xff] %vm606, %v1052
  %v1054 = vld [vmem:[#allocation3] sm:$0xff]
  %1056 = vrot.lane.b32.xlu0 %v1054, 127
  %v1057 = vpop.permute.xlu0 %1056
  %v1058 = vrot.slane %v1057, 4
  %v1059 = vsel %vm613, %v1057, %v1058
  %1061 = vst.msk [vmem:[#allocation4 + $0x8] sm:$0xff] %vm606, %v1059
  %v1062 = vld [vmem:[#allocation3] sm:$0xff]
  %1064 = vrot.lane.b32.xlu0 %v1062, 126
  %v1065 = vpop.permute.xlu0 %1064
  %v1066 = vrot.slane %v1065, 4
  %v1067 = vsel %vm622, %v1065, %v1066
  %1069 = vst.msk [vmem:[#allocation4 + $0x10] sm:$0xff] %vm606, %v1067
  %v1070 = vld [vmem:[#allocation3] sm:$0xff]
  %1072 = vrot.lane.b32.xlu0 %v1070, 118
  %v1073 = vpop.permute.xlu0 %1072
  %v1074 = vrot.slane %v1073, 4
  %v1075 = vsel %vm631, %v1073, %v1074
  %1077 = vst.msk [vmem:[#allocation4 + $0x18] sm:$0xff] %vm606, %v1075
  %v1078 = vld [vmem:[#allocation3] sm:$0xff]
  %1080 = vrot.lane.b32.xlu0 %v1078, 117
  %v1081 = vpop.permute.xlu0 %1080
  %v1082 = vrot.slane %v1081, 4
  %v1083 = vsel %vm640, %v1081, %v1082
  %1085 = vst.msk [vmem:[#allocation4 + $0x20] sm:$0xff] %vm606, %v1083
  %v1086 = vld [vmem:[#allocation3] sm:$0xff]
  %1088 = vrot.lane.b32.xlu0 %v1086, 116
  %v1089 = vpop.permute.xlu0 %1088
  %v1090 = vrot.slane %v1089, 4
  %v1091 = vsel %vm649, %v1089, %v1090
  %1093 = vst.msk [vmem:[#allocation4 + $0x28] sm:$0xff] %vm606, %v1091
  %v1094 = vld [vmem:[#allocation3] sm:$0xff]
  %1096 = vrot.lane.b32.xlu0 %v1094, 108
  %v1097 = vpop.permute.xlu0 %1096
  %v1098 = vrot.slane %v1097, 4
  %v1099 = vsel %vm658, %v1097, %v1098
  %1101 = vst.msk [vmem:[#allocation4 + $0x30] sm:$0xff] %vm606, %v1099
  %v1102 = vld [vmem:[#allocation3] sm:$0xff]
  %1104 = vrot.lane.b32.xlu0 %v1102, 107
  %v1105 = vpop.permute.xlu0 %1104
  %v1106 = vrot.slane %v1105, 4
  %v1107 = vsel %vm667, %v1105, %v1106
  %1109 = vst.msk [vmem:[#allocation4 + $0x38] sm:$0xff] %vm606, %v1107
  %v1110 = vld [vmem:[#allocation3] sm:$0xff]
  %1112 = vrot.lane.b32.xlu0 %v1110, 106
  %v1113 = vpop.permute.xlu0 %1112
  %v1114 = vrot.slane %v1113, 4
  %v1115 = vsel %vm676, %v1113, %v1114
  %1117 = vst.msk [vmem:[#allocation4 + $0x40] sm:$0xff] %vm606, %v1115
  %v1118 = vld [vmem:[%s10] sm:$0xf]
  %v1119 = vld [vmem:[#allocation4] sm:$0xff]
  %v1120 = vld [vmem:[#allocation4 + $0x8] sm:$0xff]
  %v1121 = vld [vmem:[#allocation4 + $0x10] sm:$0xff]
  %v1122 = vld [vmem:[#allocation4 + $0x18] sm:$0xff]
  %v1123 = vld [vmem:[#allocation4 + $0x20] sm:$0xff]
  %v1124 = vld [vmem:[#allocation4 + $0x28] sm:$0xff]
  %v1125 = vld [vmem:[#allocation4 + $0x30] sm:$0xff]
  %v1126 = vld [vmem:[#allocation4 + $0x38] sm:$0xff]
  %v1127 = vld [vmem:[#allocation4 + $0x40] sm:$0xff]
  %v1137 = vunpack.c.l.b16 %v1119
  %v1138 = vunpack.c.h.b16 %v1119
  %v1139 = vunpack.c.l.b16 %v1120
  %v1140 = vunpack.c.h.b16 %v1120
  %v1141 = vunpack.c.l.b16 %v1121
  %v1142 = vunpack.c.h.b16 %v1121
  %v1143 = vunpack.c.l.b16 %v1122
  %v1144 = vunpack.c.h.b16 %v1122
  %v1145 = vunpack.c.l.b16 %v1123
  %v1146 = vunpack.c.h.b16 %v1123
  %v1147 = vunpack.c.l.b16 %v1124
  %v1148 = vunpack.c.h.b16 %v1124
  %v1149 = vunpack.c.l.b16 %v1125
  %v1150 = vunpack.c.h.b16 %v1125
  %v1151 = vunpack.c.l.b16 %v1126
  %v1152 = vunpack.c.h.b16 %v1126
  %v1153 = vunpack.c.l.b16 %v1127
  %v1154 = vunpack.c.h.b16 %v1127
  %v1155 = vpack.c.b16 %v1139, %v1137
  %v1156 = vpack.c.b16 %v1140, %v1138
  %v1157 = vpack.c.b16 %v1143, %v1141
  %v1158 = vpack.c.b16 %v1144, %v1142
  %v1159 = vpack.c.b16 %v1147, %v1145
  %v1160 = vpack.c.b16 %v1148, %v1146
  %v1161 = vpack.c.b16 %v1151, %v1149
  %v1162 = vpack.c.b16 %v1152, %v1150
  %v1163 = vpack.c.b16 %v1153, %v1153
  %v1164 = vpack.c.b16 %v1154, %v1154
  %v1174 = vsel %vm540, %v1118, 0
  %v1177 = vsel %vm88, %v1163, 0
  %v1180 = vsel %vm88, %v1164, 0
  %1182 = vmatpush.bf16.msra.mxu0 0
  %1183 = vmatpush.bf16.msra.mxu0 0
  %1184 = vmatpush.bf16.msra.mxu0 0
  %1185 = vmatpush.bf16.msra.mxu0 %v1177
  %1186 = vmatpush.bf16.msra.mxu0 %v1161
  %1187 = vmatpush.bf16.msra.mxu0 %v1159
  %1188 = vmatpush.bf16.msra.mxu0 %v1157
  %1189 = vmatpush.bf16.msra.mxu0 %v1155
  %1190 = vmatmul.bf16.gmra.mxu0 %v1174
  %v1191 = vpop.f32.mrf.mxu0
  %v1192 = vadd.f32 %v770, %v1191
  %v1193 = vpop.f32.mrf.mxu0
  %1194 = vdwg.mxu0
  %1195 = vmatpush.bf16.msra.mxu0 0
  %1196 = vmatpush.bf16.msra.mxu0 0
  %1197 = vmatpush.bf16.msra.mxu0 0
  %1198 = vmatpush.bf16.msra.mxu0 %v1180
  %1199 = vmatpush.bf16.msra.mxu0 %v1162
  %1200 = vmatpush.bf16.msra.mxu0 %v1160
  %1201 = vmatpush.bf16.msra.mxu0 %v1158
  %1202 = vmatpush.bf16.msra.mxu0 %v1156
  %1203 = vmatmul.bf16.gmra.mxu0 %v1174
  %v1204 = vpop.f32.mrf.mxu0
  %v1205 = vadd.f32 %v771, %v1204
  %v1206 = vpop.f32.mrf.mxu0
  %1207 = vdwg.mxu0
  %v1208 = vmul.f32 %v1192, %v534
  %v1209 = vmul.f32 %v1205, %v535
  %1210 = vst [vmem:[%s15] sm:$0xff] %v1208
  %1211 = vst.msk [vmem:[%s15 + $0x8] sm:$0xff] %vm540, %v1209
  // Predicated region
  $region62: #{_lambda_.1} parent=0 // pred_check
    _
  $region63: #{_lambda_.1} parent=0 // pred_check_branch
    %1213 = sbr.rel (0) target = $region65
  $region64: #{_lambda_.1} parent=0 // pred_region
    _
  $region65: #{_lambda_.1} parent=0 // pred_fallthru
    _
  // Predicated region
  $region66: #{_lambda_.1} parent=0 // pred_check
    _
  $region67: #{_lambda_.1} parent=0 // pred_check_branch
    %1215 = sbr.rel (0) target = $region69
  $region68: #{_lambda_.1} parent=0 // pred_region
    _
  $region69: #{_lambda_.1} parent=0 // pred_fallthru
    _

</llo_original>
